<compile_context>
chip_gen: v7x
topology: tpu7x:2x2x1
jax: 0.10.0
libtpu: 0.0.40
codegen_flags: <defaults>
</compile_context>

<pallas_src>
import jax
import jax.numpy as jnp
from jax.experimental import pallas as pl
from jax.experimental.pallas import tpu as pltpu


def _round_up(n, m):
    return ((n + m - 1) // m) * m


def _pick_tile_b(B, tile_b):
    """Pick the batch tile.

    - B < 16: use the full batch as one block (block dim == array dim is always
      legal, no partial-tile handling needed for tiny demos).
    - Otherwise: split B into the fewest tiles such that tiles are <= tile_b,
      forcing >= 2 tiles for B >= 512 so both v7x TensorCores get work, then
      round the tile to the 16-row bf16 sublane quantum. Any trailing partial
      tile wastes at most 15 rows (masked by Pallas), instead of up to tb-1.
    """
    if B < 16:
        return B
    n_tiles = max(pl.cdiv(B, tile_b), 2 if B >= 512 else 1)
    return _round_up(pl.cdiv(B, n_tiles), 16)


def encoder_kernel(x_ref, w_in_ref, b_in_ref, w_heads_ref, b_heads_ref, out_ref):
    # Cast the f32 activation tile to bf16 in-register (no extra HBM pass),
    # then hidden layer: bf16 x bf16 -> f32 accumulate on the MXU.
    x = x_ref[...].astype(jnp.bfloat16)                     # [tb, 784]
    h = jnp.dot(x, w_in_ref[...], preferred_element_type=jnp.float32)
    h = jnp.maximum(h + b_in_ref[...], 0.0)                 # f32 epilogue (v5e-safe)

    # Fused mean/std heads: one matmul, one lane-dense 128-wide store.
    out = jnp.dot(h.astype(jnp.bfloat16), w_heads_ref[...],
                  preferred_element_type=jnp.float32) + b_heads_ref[...]
    out_ref[...] = out.astype(out_ref.dtype)


def encoder_forward(x, w_in, b_in, w_mu, b_mu, w_std, b_std, tile_b=512):
    """x: [B, 784] (f32); weights stored pre-transposed as [in, out]; biases as [1, out]."""
    B, D = x.shape
    H = w_in.shape[1]
    Z = w_mu.shape[1]

    H_pad = _round_up(H, 128)
    ZZ = 2 * Z
    ZZ_pad = _round_up(ZZ, 128)

    tb = _pick_tile_b(B, tile_b)
    grid = (pl.cdiv(B, tb),)

    # One-time weight packing (pad feature dims to lane multiples, cast to bf16).
    # Zero padding is exact: padded columns/rows contribute 0, relu(0)=0, and the
    # padded output lanes are sliced off below. In a real model these packed
    # weights would be prepared once at init, not per call.
    w_in_p = jnp.zeros((D, H_pad), jnp.bfloat16).at[:, :H].set(w_in.astype(jnp.bfloat16))
    b_in_p = jnp.zeros((1, H_pad), jnp.float32).at[:, :H].set(b_in.astype(jnp.float32))

    w_heads = jnp.concatenate([w_mu, w_std], axis=1).astype(jnp.bfloat16)   # [H, 2Z]
    b_heads = jnp.concatenate([b_mu, b_std], axis=1).astype(jnp.float32)    # [1, 2Z]
    w_heads_p = jnp.zeros((H_pad, ZZ_pad), jnp.bfloat16).at[:H, :ZZ].set(w_heads)
    b_heads_p = jnp.zeros((1, ZZ_pad), jnp.float32).at[:, :ZZ].set(b_heads)

    out = pl.pallas_call(
        encoder_kernel,
        out_shape=jax.ShapeDtypeStruct((B, ZZ_pad), x.dtype),
        grid_spec=pltpu.PrefetchScalarGridSpec(
            num_scalar_prefetch=0,
            grid=grid,
            in_specs=[
                # x: streamed over batch, full (unpadded) feature dim = 784.
                pl.BlockSpec((tb, D), lambda i: (i, 0)),
                pl.BlockSpec((D, H_pad), lambda i: (0, 0)),      # W_in: VMEM-resident
                pl.BlockSpec((1, H_pad), lambda i: (0, 0)),      # b_in: resident
                pl.BlockSpec((H_pad, ZZ_pad), lambda i: (0, 0)), # fused heads W: resident
                pl.BlockSpec((1, ZZ_pad), lambda i: (0, 0)),     # fused heads b: resident
            ],
            out_specs=pl.BlockSpec((tb, ZZ_pad), lambda i: (i, 0)),
        ),
        compiler_params=pltpu.CompilerParams(
            dimension_semantics=("parallel",),   # v7x: shard batch tiles across 2 TCs
        ),
    )(x, w_in_p, b_in_p, w_heads_p, b_heads_p)

    # Narrow, non-lane-aligned slices of a [B, 128] slab: small residual cost;
    # keeping the fused 128-wide head is cheaper overall than padding each head
    # to its own 128 lanes (which would add ~10% MXU work + output traffic).
    mean = out[:, :Z]
    std = out[:, Z:ZZ]
    return mean, std


def init_linear(key, fan_in, fan_out, dtype=jnp.float32):
    """Mimics torch.nn.Linear default init: U(-1/sqrt(fan_in), 1/sqrt(fan_in)).
    Returns weight as [in, out] (pre-transposed) and bias as [1, out]."""
    kw, kb = jax.random.split(key)
    bound = 1.0 / jnp.sqrt(jnp.array(fan_in, dtype=jnp.float32))
    w = jax.random.uniform(kw, (fan_in, fan_out), dtype, -bound, bound)
    b = jax.random.uniform(kb, (1, fan_out), dtype, -bound, bound)
    return w, b


if __name__ == "__main__":
    # Shapes implied by the module: input = 28*28 = 784, hidden_dim=500, z_dim=20.
    batch = 2
    in_dim = 28 * 28
    hidden_dim = 500
    z_dim = 20

    root = jax.random.PRNGKey(0)
    k_x, k_in, k_mu, k_std = jax.random.split(root, 4)

    x = jax.random.normal(k_x, (batch, in_dim), jnp.float32)
    w_in, b_in = init_linear(k_in, in_dim, hidden_dim)
    w_mu, b_mu = init_linear(k_mu, hidden_dim, z_dim)
    w_std, b_std = init_linear(k_std, hidden_dim, z_dim)

    mean, std = encoder_forward(x, w_in, b_in, w_mu, b_mu, w_std, b_std)
    jax.block_until_ready((mean, std))
    assert mean.shape == (batch, z_dim) and std.shape == (batch, z_dim)

    # Reference 1: bf16-matched numerics (same casts as the kernel) -> tight check.
    xb = x.astype(jnp.bfloat16)
    h_bf = jnp.maximum(
        jnp.dot(xb, w_in.astype(jnp.bfloat16), preferred_element_type=jnp.float32) + b_in, 0.0)
    hb = h_bf.astype(jnp.bfloat16)
    mean_bf = jnp.dot(hb, w_mu.astype(jnp.bfloat16), preferred_element_type=jnp.float32) + b_mu
    std_bf = jnp.dot(hb, w_std.astype(jnp.bfloat16), preferred_element_type=jnp.float32) + b_std
    assert jnp.allclose(mean, mean_bf, atol=2e-3, rtol=2e-3)
    assert jnp.allclose(std, std_bf, atol=2e-3, rtol=2e-3)

    # Reference 2: full-f32 math (the PyTorch module's semantics) -> loose check
    # accounting for the intentional bf16 MXU inputs.
    h_ref = jnp.maximum(x @ w_in + b_in, 0.0)
    mean_ref = h_ref @ w_mu + b_mu
    std_ref = h_ref @ w_std + b_std
    assert jnp.allclose(mean, mean_ref, atol=5e-2, rtol=5e-2)
    assert jnp.allclose(std, std_ref, atol=5e-2, rtol=5e-2)

    # TODO(synk): the PyTorch module applies no positivity transform to `std`;
    # this is preserved verbatim (consumer must apply exp/softplus if needed).
    print("KERNEL_OK")
</pallas_src>

<mosaic_0001>
module attributes {stable_mosaic.version = 11 : i64} {
  func.func @encoder_kernel(%arg0: i32, %arg1: memref<2x784xf32, #tpu.memory_space<vmem>>, %arg2: memref<784x512xbf16, #tpu.memory_space<vmem>>, %arg3: memref<1x512xf32, #tpu.memory_space<vmem>>, %arg4: memref<512x128xbf16, #tpu.memory_space<vmem>>, %arg5: memref<1x128xf32, #tpu.memory_space<vmem>>, %arg6: memref<2x128xf32, #tpu.memory_space<vmem>>) attributes {dimension_semantics = [#tpu.dimension_semantics<parallel>], iteration_bounds = array<i64: 1>, scalar_prefetch = 0 : i64, scratch_operands = 0 : i64, tpu.core_type = #tpu.core_type<tc>, window_params = [{transform_indices = @transform_0, window_bounds = array<i64: 2, 784>}, {pipeline_mode = #tpu.pipeline_mode<synchronous>, transform_indices = @transform_1, window_bounds = array<i64: 784, 512>}, {pipeline_mode = #tpu.pipeline_mode<synchronous>, transform_indices = @transform_2, window_bounds = array<i64: 1, 512>}, {pipeline_mode = #tpu.pipeline_mode<synchronous>, transform_indices = @transform_3, window_bounds = array<i64: 512, 128>}, {pipeline_mode = #tpu.pipeline_mode<synchronous>, transform_indices = @transform_4, window_bounds = array<i64: 1, 128>}, {transform_indices = @transform_5, window_bounds = array<i64: 2, 128>}]} {
    %c0 = arith.constant 0 : index
    %c0_0 = arith.constant 0 : index
    %0 = vector.load %arg1[%c0, %c0_0] : memref<2x784xf32, #tpu.memory_space<vmem>>, vector<2x784xf32>
    %1 = arith.truncf %0 : vector<2x784xf32> to vector<2x784xbf16>
    %c0_1 = arith.constant 0 : index
    %c0_2 = arith.constant 0 : index
    %2 = vector.load %arg2[%c0_1, %c0_2] : memref<784x512xbf16, #tpu.memory_space<vmem>>, vector<784x512xbf16>
    %cst = arith.constant dense<0.000000e+00> : vector<2x512xf32>
    %3 = tpu.matmul %1, %2, %cst {dimension_numbers = #tpu.dot_dimension_numbers<[1], [0], [0], [1], [0, 0, 1, 1], [], []>} : vector<2x784xbf16>, vector<784x512xbf16>, vector<2x512xf32> -> vector<2x512xf32>
    %c0_3 = arith.constant 0 : index
    %c0_4 = arith.constant 0 : index
    %4 = vector.load %arg3[%c0_3, %c0_4] : memref<1x512xf32, #tpu.memory_space<vmem>>, vector<1x512xf32>
    %5 = vector.broadcast %4 : vector<1x512xf32> to vector<2x512xf32>
    %6 = arith.addf %3, %5 : vector<2x512xf32>
    %cst_5 = arith.constant 0.000000e+00 : f32
    %7 = vector.broadcast %cst_5 : f32 to vector<2x512xf32>
    %8 = arith.maximumf %6, %7 : vector<2x512xf32>
    %9 = arith.truncf %8 : vector<2x512xf32> to vector<2x512xbf16>
    %c0_6 = arith.constant 0 : index
    %c0_7 = arith.constant 0 : index
    %10 = vector.load %arg4[%c0_6, %c0_7] : memref<512x128xbf16, #tpu.memory_space<vmem>>, vector<512x128xbf16>
    %cst_8 = arith.constant dense<0.000000e+00> : vector<2x128xf32>
    %11 = tpu.matmul %9, %10, %cst_8 {dimension_numbers = #tpu.dot_dimension_numbers<[1], [0], [0], [1], [0, 0, 1, 1], [], []>} : vector<2x512xbf16>, vector<512x128xbf16>, vector<2x128xf32> -> vector<2x128xf32>
    %c0_9 = arith.constant 0 : index
    %c0_10 = arith.constant 0 : index
    %12 = vector.load %arg5[%c0_9, %c0_10] : memref<1x128xf32, #tpu.memory_space<vmem>>, vector<1x128xf32>
    %13 = vector.broadcast %12 : vector<1x128xf32> to vector<2x128xf32>
    %14 = arith.addf %11, %13 : vector<2x128xf32>
    %c0_11 = arith.constant 0 : index
    %c0_12 = arith.constant 0 : index
    %15 = vector.load %arg6[%c0_11, %c0_12] : memref<2x128xf32, #tpu.memory_space<vmem>>, vector<2x128xf32>
    tpu.vector_store %arg6[%c0_11, %c0_12], %14 {strides = array<i32>} : memref<2x128xf32, #tpu.memory_space<vmem>>, vector<2x128xf32>,
    return
  }
  func.func @transform_0(%arg0: i32) -> (i32, i32) {
    %c0_i32 = arith.constant 0 : i32
    %c0_i32_0 = arith.constant 0 : i32
    return %arg0, %c0_i32 : i32, i32
  }
  func.func @transform_1(%arg0: i32) -> (i32, i32) {
    %c0_i32 = arith.constant 0 : i32
    %c0_i32_0 = arith.constant 0 : i32
    %c0_i32_1 = arith.constant 0 : i32
    return %c0_i32, %c0_i32_0 : i32, i32
  }
  func.func @transform_2(%arg0: i32) -> (i32, i32) {
    %c0_i32 = arith.constant 0 : i32
    %c0_i32_0 = arith.constant 0 : i32
    %c0_i32_1 = arith.constant 0 : i32
    return %c0_i32, %c0_i32_0 : i32, i32
  }
  func.func @transform_3(%arg0: i32) -> (i32, i32) {
    %c0_i32 = arith.constant 0 : i32
    %c0_i32_0 = arith.constant 0 : i32
    %c0_i32_1 = arith.constant 0 : i32
    return %c0_i32, %c0_i32_0 : i32, i32
  }
  func.func @transform_4(%arg0: i32) -> (i32, i32) {
    %c0_i32 = arith.constant 0 : i32
    %c0_i32_0 = arith.constant 0 : i32
    %c0_i32_1 = arith.constant 0 : i32
    return %c0_i32, %c0_i32_0 : i32, i32
  }
  func.func @transform_5(%arg0: i32) -> (i32, i32) {
    %c0_i32 = arith.constant 0 : i32
    %c0_i32_0 = arith.constant 0 : i32
    return %arg0, %c0_i32 : i32, i32
  }
}

</mosaic_0001>

<llo_original>
// kernel: tpu_custom_call.1
$region0: #{tpu_custom_call.1}
  #allocation0 [shape = 'u32[]', space=smem, size = 0x4, offset = 0x4, fixed_abs, tag = 'smem constant byte address 0x4 - core index']
  #allocation1 [shape = 'u32[144,128]{1,0:T(1,128)}', space=vmem, size = 0x12000, scoped, tag = 'internal scratch']
  %s0 = inlined_call_operand.hbm [shape: f32[2,784], index: 0, kind: input, shape index: {}]
  %s1 = inlined_call_operand.hbm [shape: bf16[784,512], index: 1, kind: input, shape index: {}]
  %s2 = inlined_call_operand.vmem [shape: f32[1,512], index: 2, kind: input, shape index: {}]
  %s3 = inlined_call_operand.hbm [shape: bf16[512,128], index: 3, kind: input, shape index: {}]
  %s4 = inlined_call_operand.vmem [shape: f32[1,128], index: 4, kind: input, shape index: {}]
  %s5 = inlined_call_operand.hbm [shape: f32[2,128], index: 5, kind: output, shape index: {}]
  %s6 = sld [smem:[#allocation0]]
  $region42: #{tpu_custom_call.1} parent=0
    _
  %s8 = ssub.s32 1, %s6
  %s9 = scalar_select 0, %s8, %s6
  $region1: #{tpu_custom_call.1} parent=0
    #allocation2 [shape = 'u8[7168]{0}', space=vmem, size = 0x1c00, scoped, tag = 'input window, operand 0, single buffered']
    #allocation3 [shape = 's32[1]{0}', space=sflag, size = 0x4, scoped, tag = 'scoped memory for tpu_custom_call.1']
    #allocation4 [shape = 's32[1]{0}', space=sflag, size = 0x4, scoped, tag = 'scoped memory for tpu_custom_call.1']
    #allocation5 [shape = 'u8[802816]{0}', space=vmem, size = 0xc4000, scoped, tag = 'input window, operand 1, single buffered']
    #allocation6 [shape = 's32[1]{0}', space=sflag, size = 0x4, scoped, tag = 'scoped memory for tpu_custom_call.1']
    #allocation7 [shape = 'u8[131072]{0}', space=vmem, size = 0x20000, scoped, tag = 'input window, operand 3, single buffered']
    #allocation8 [shape = 'u8[1024]{0}', space=vmem, size = 0x400, scoped, tag = 'output window, operand 0, single buffered']
    %10 = vsyncpa [#allocation3], 0
    %11 = vsyncpa [#allocation6], 0
    %12 = vsyncpa [#allocation4], 0
    // Predicated region
    $region2: #{tpu_custom_call.1} parent=1 // pred_check
      _
    $region3: #{tpu_custom_call.1} parent=1 // pred_check_branch
      %14 = sbr.rel (0) target = $region5
    $region4: #{tpu_custom_call.1} parent=1 // pred_region
      %s16 = ssub.s32 224, 224
      %17 = vsyncadd [#allocation3], %s16
      %s19 = sshll.u32 [#allocation2], 4
      %s20 = int_to_ptr.vmem [resolvable:$true] %s19
      %22 = dma.hbm_to_vmem [thread:$0]  %s0, 224, %s20, [#allocation3]
    $region5: #{tpu_custom_call.1} parent=1 // pred_fallthru
      _
    // Predicated region
    $region6: #{tpu_custom_call.1} parent=1 // pred_check
      _
    $region7: #{tpu_custom_call.1} parent=1 // pred_check_branch
      %24 = sbr.rel (0) target = $region9
    $region8: #{tpu_custom_call.1} parent=1 // pred_region
      %s26 = ssub.s32 25088, 25088
      %27 = vsyncadd [#allocation6], %s26
      %s28 = sshll.u32 [#allocation5], 4
      %s29 = int_to_ptr.vmem [resolvable:$true] %s28
      %34 = dma.hbm_to_vmem [thread:$0]  %s1, 25088, %s29, [#allocation6], 256, 256, 16
    $region9: #{tpu_custom_call.1} parent=1 // pred_fallthru
      _
    // Predicated region
    $region10: #{tpu_custom_call.1} parent=1 // pred_check
      _
    $region11: #{tpu_custom_call.1} parent=1 // pred_check_branch
      %36 = sbr.rel (0) target = $region13
    $region12: #{tpu_custom_call.1} parent=1 // pred_region
      _
    $region13: #{tpu_custom_call.1} parent=1 // pred_fallthru
      _
    // Predicated region
    $region14: #{tpu_custom_call.1} parent=1 // pred_check
      _
    $region15: #{tpu_custom_call.1} parent=1 // pred_check_branch
      %38 = sbr.rel (0) target = $region17
    $region16: #{tpu_custom_call.1} parent=1 // pred_region
      %s40 = ssub.s32 4096, 4096
      %41 = vsyncadd [#allocation6], %s40
      %s42 = sshll.u32 [#allocation7], 4
      %s43 = int_to_ptr.vmem [resolvable:$true] %s42
      %48 = dma.hbm_to_vmem [thread:$0]  %s3, 4096, %s43, [#allocation6], 64, 64, 4
    $region17: #{tpu_custom_call.1} parent=1 // pred_fallthru
      _
    // Predicated region
    $region18: #{tpu_custom_call.1} parent=1 // pred_check
      _
    $region19: #{tpu_custom_call.1} parent=1 // pred_check_branch
      %50 = sbr.rel (0) target = $region21
    $region20: #{tpu_custom_call.1} parent=1 // pred_region
      _
    $region21: #{tpu_custom_call.1} parent=1 // pred_fallthru
      _
    // Predicated region
    $region22: #{tpu_custom_call.1} parent=1 // pred_check
      _
    $region23: #{tpu_custom_call.1} parent=1 // pred_check_branch
      %52 = sbr.rel (0) target = $region25
    $region24: #{tpu_custom_call.1} parent=1 // pred_region
      %53 = dma.done [#allocation3], 224
    $region25: #{tpu_custom_call.1} parent=1 // pred_fallthru
      _
    // Predicated region
    $region26: #{tpu_custom_call.1} parent=1 // pred_check
      _
    $region27: #{tpu_custom_call.1} parent=1 // pred_check_branch
      %55 = sbr.rel (0) target = $region29
    $region28: #{tpu_custom_call.1} parent=1 // pred_region
      %56 = dma.done [#allocation6], 25088
    $region29: #{tpu_custom_call.1} parent=1 // pred_fallthru
      _
    // Predicated region
    $region30: #{tpu_custom_call.1} parent=1 // pred_check
      _
    $region31: #{tpu_custom_call.1} parent=1 // pred_check_branch
      %58 = sbr.rel (0) target = $region33
    $region32: #{tpu_custom_call.1} parent=1 // pred_region
      %59 = dma.done [#allocation6], 4096
    $region33: #{tpu_custom_call.1} parent=1 // pred_fallthru
      _
    %v61 = vld [vmem:[#allocation2] sm:$0xff]
    %v62 = vld [vmem:[#allocation2 + $0x8] sm:$0x3f]
    %v65 = vcombine.high %v61, %v61
    %v67 = vunpack.c.l.s4 1983009808
    %v68 = vunpack.c.0.s8 %v67
    %v69 = vlaneseq
    %v70 = vshrl.u32 %v69, 7
    %v71 = vsub.s32 %v68, %v70
    %v72 = vrot.slane %v61, %v71
    %v74 = vunpack.c.l.s4 1983009808
    %v75 = vunpack.c.0.s8 %v74
    %v76 = vlaneseq
    %v77 = vshrl.u32 %v76, 7
    %v78 = vsub.s32 %v75, %v77
    %v79 = vrot.slane %v65, %v78
    %v80 = vcombine.high %v72, %v72
    %v81 = vcombine.high %v79, %v79
    %v82 = vcombine.high %v62, %v62
    %v84 = vunpack.c.l.s4 1983009808
    %v85 = vunpack.c.0.s8 %v84
    %v86 = vlaneseq
    %v87 = vshrl.u32 %v86, 7
    %v88 = vsub.s32 %v85, %v87
    %v89 = vrot.slane %v62, %v88
    %v91 = vunpack.c.l.s4 1983009808
    %v92 = vunpack.c.0.s8 %v91
    %v93 = vlaneseq
    %v94 = vshrl.u32 %v93, 7
    %v95 = vsub.s32 %v92, %v94
    %v96 = vrot.slane %v82, %v95
    %v97 = vcombine.high %v89, %v89
    %v105 = vpack.c.bf16 %v72, %v72
    %v106 = vpack.c.bf16 %v80, %v80
    %v107 = vpack.c.bf16 %v79, %v79
    %v108 = vpack.c.bf16 %v81, %v81
    %v109 = vpack.c.bf16 %v89, %v89
    %v110 = vpack.c.bf16 %v97, %v97
    %v111 = vpack.c.bf16 %v96, %v96
    %v112 = vld [vmem:[#allocation5] sm:$0xff]
    %v113 = vld [vmem:[#allocation5 + $0x8] sm:$0xff]
    %v114 = vld [vmem:[#allocation5 + $0x10] sm:$0xff]
    %v115 = vld [vmem:[#allocation5 + $0x18] sm:$0xff]
    %v116 = vld [vmem:[#allocation5 + $0x20] sm:$0xff]
    %v117 = vld [vmem:[#allocation5 + $0x28] sm:$0xff]
    %v118 = vld [vmem:[#allocation5 + $0x30] sm:$0xff]
    %v119 = vld [vmem:[#allocation5 + $0x38] sm:$0xff]
    %v120 = vld [vmem:[#allocation5 + $0x40] sm:$0xff]
    %v121 = vld [vmem:[#allocation5 + $0x48] sm:$0xff]
    %v122 = vld [vmem:[#allocation5 + $0x50] sm:$0xff]
    %v123 = vld [vmem:[#allocation5 + $0x58] sm:$0xff]
    %v124 = vld [vmem:[#allocation5 + $0x60] sm:$0xff]
    %v125 = vld [vmem:[#allocation5 + $0x68] sm:$0xff]
    %v126 = vld [vmem:[#allocation5 + $0x70] sm:$0xff]
    %v127 = vld [vmem:[#allocation5 + $0x78] sm:$0xff]
    %v128 = vld [vmem:[#allocation5 + $0x80] sm:$0xff]
    %v129 = vld [vmem:[#allocation5 + $0x88] sm:$0xff]
    %v130 = vld [vmem:[#allocation5 + $0x90] sm:$0xff]
    %v131 = vld [vmem:[#allocation5 + $0x98] sm:$0xff]
    %v132 = vld [vmem:[#allocation5 + $0xa0] sm:$0xff]
    %v133 = vld [vmem:[#allocation5 + $0xa8] sm:$0xff]
    %v134 = vld [vmem:[#allocation5 + $0xb0] sm:$0xff]
    %v135 = vld [vmem:[#allocation5 + $0xb8] sm:$0xff]
    %v136 = vld [vmem:[#allocation5 + $0xc0] sm:$0xff]
    %v137 = vld [vmem:[#allocation5 + $0xc8] sm:$0xff]
    %v138 = vld [vmem:[#allocation5 + $0xd0] sm:$0xff]
    %v139 = vld [vmem:[#allocation5 + $0xd8] sm:$0xff]
    %v140 = vld [vmem:[#allocation5 + $0xe0] sm:$0xff]
    %v141 = vld [vmem:[#allocation5 + $0xe8] sm:$0xff]
    %v142 = vld [vmem:[#allocation5 + $0xf0] sm:$0xff]
    %v143 = vld [vmem:[#allocation5 + $0xf8] sm:$0xff]
    %v144 = vld [vmem:[#allocation5 + $0x100] sm:$0xff]
    %v145 = vld [vmem:[#allocation5 + $0x108] sm:$0xff]
    %v146 = vld [vmem:[#allocation5 + $0x110] sm:$0xff]
    %v147 = vld [vmem:[#allocation5 + $0x118] sm:$0xff]
    %v148 = vld [vmem:[#allocation5 + $0x120] sm:$0xff]
    %v149 = vld [vmem:[#allocation5 + $0x128] sm:$0xff]
    %v150 = vld [vmem:[#allocation5 + $0x130] sm:$0xff]
    %v151 = vld [vmem:[#allocation5 + $0x138] sm:$0xff]
    %v152 = vld [vmem:[#allocation5 + $0x140] sm:$0xff]
    %v153 = vld [vmem:[#allocation5 + $0x148] sm:$0xff]
    %v154 = vld [vmem:[#allocation5 + $0x150] sm:$0xff]
    %v155 = vld [vmem:[#allocation5 + $0x158] sm:$0xff]
    %v156 = vld [vmem:[#allocation5 + $0x160] sm:$0xff]
    %v157 = vld [vmem:[#allocation5 + $0x168] sm:$0xff]
    %v158 = vld [vmem:[#allocation5 + $0x170] sm:$0xff]
    %v159 = vld [vmem:[#allocation5 + $0x178] sm:$0xff]
    %v160 = vld [vmem:[#allocation5 + $0x180] sm:$0xff]
    %v161 = vld [vmem:[#allocation5 + $0x188] sm:$0xff]
    %v162 = vld [vmem:[#allocation5 + $0x190] sm:$0xff]
    %v163 = vld [vmem:[#allocation5 + $0x198] sm:$0xff]
    %v164 = vld [vmem:[#allocation5 + $0x1a0] sm:$0xff]
    %v165 = vld [vmem:[#allocation5 + $0x1a8] sm:$0xff]
    %v166 = vld [vmem:[#allocation5 + $0x1b0] sm:$0xff]
    %v167 = vld [vmem:[#allocation5 + $0x1b8] sm:$0xff]
    %v168 = vld [vmem:[#allocation5 + $0x1c0] sm:$0xff]
    %v169 = vld [vmem:[#allocation5 + $0x1c8] sm:$0xff]
    %v170 = vld [vmem:[#allocation5 + $0x1d0] sm:$0xff]
    %v171 = vld [vmem:[#allocation5 + $0x1d8] sm:$0xff]
    %v172 = vld [vmem:[#allocation5 + $0x1e0] sm:$0xff]
    %v173 = vld [vmem:[#allocation5 + $0x1e8] sm:$0xff]
    %v174 = vld [vmem:[#allocation5 + $0x1f0] sm:$0xff]
    %v175 = vld [vmem:[#allocation5 + $0x1f8] sm:$0xff]
    %v176 = vld [vmem:[#allocation5 + $0x200] sm:$0xff]
    %v177 = vld [vmem:[#allocation5 + $0x208] sm:$0xff]
    %v178 = vld [vmem:[#allocation5 + $0x210] sm:$0xff]
    %v179 = vld [vmem:[#allocation5 + $0x218] sm:$0xff]
    %v180 = vld [vmem:[#allocation5 + $0x220] sm:$0xff]
    %v181 = vld [vmem:[#allocation5 + $0x228] sm:$0xff]
    %v182 = vld [vmem:[#allocation5 + $0x230] sm:$0xff]
    %v183 = vld [vmem:[#allocation5 + $0x238] sm:$0xff]
    %v184 = vld [vmem:[#allocation5 + $0x240] sm:$0xff]
    %v185 = vld [vmem:[#allocation5 + $0x248] sm:$0xff]
    %v186 = vld [vmem:[#allocation5 + $0x250] sm:$0xff]
    %v187 = vld [vmem:[#allocation5 + $0x258] sm:$0xff]
    %v188 = vld [vmem:[#allocation5 + $0x260] sm:$0xff]
    %v189 = vld [vmem:[#allocation5 + $0x268] sm:$0xff]
    %v190 = vld [vmem:[#allocation5 + $0x270] sm:$0xff]
    %v191 = vld [vmem:[#allocation5 + $0x278] sm:$0xff]
    %v192 = vld [vmem:[#allocation5 + $0x280] sm:$0xff]
    %v193 = vld [vmem:[#allocation5 + $0x288] sm:$0xff]
    %v194 = vld [vmem:[#allocation5 + $0x290] sm:$0xff]
    %v195 = vld [vmem:[#allocation5 + $0x298] sm:$0xff]
    %v196 = vld [vmem:[#allocation5 + $0x2a0] sm:$0xff]
    %v197 = vld [vmem:[#allocation5 + $0x2a8] sm:$0xff]
    %v198 = vld [vmem:[#allocation5 + $0x2b0] sm:$0xff]
    %v199 = vld [vmem:[#allocation5 + $0x2b8] sm:$0xff]
    %v200 = vld [vmem:[#allocation5 + $0x2c0] sm:$0xff]
    %v201 = vld [vmem:[#allocation5 + $0x2c8] sm:$0xff]
    %v202 = vld [vmem:[#allocation5 + $0x2d0] sm:$0xff]
    %v203 = vld [vmem:[#allocation5 + $0x2d8] sm:$0xff]
    %v204 = vld [vmem:[#allocation5 + $0x2e0] sm:$0xff]
    %v205 = vld [vmem:[#allocation5 + $0x2e8] sm:$0xff]
    %v206 = vld [vmem:[#allocation5 + $0x2f0] sm:$0xff]
    %v207 = vld [vmem:[#allocation5 + $0x2f8] sm:$0xff]
    %v208 = vld [vmem:[#allocation5 + $0x300] sm:$0xff]
    %v209 = vld [vmem:[#allocation5 + $0x308] sm:$0xff]
    %v210 = vld [vmem:[#allocation5 + $0x310] sm:$0xff]
    %v211 = vld [vmem:[#allocation5 + $0x318] sm:$0xff]
    %v212 = vld [vmem:[#allocation5 + $0x320] sm:$0xff]
    %v213 = vld [vmem:[#allocation5 + $0x328] sm:$0xff]
    %v214 = vld [vmem:[#allocation5 + $0x330] sm:$0xff]
    %v215 = vld [vmem:[#allocation5 + $0x338] sm:$0xff]
    %v216 = vld [vmem:[#allocation5 + $0x340] sm:$0xff]
    %v217 = vld [vmem:[#allocation5 + $0x348] sm:$0xff]
    %v218 = vld [vmem:[#allocation5 + $0x350] sm:$0xff]
    %v219 = vld [vmem:[#allocation5 + $0x358] sm:$0xff]
    %v220 = vld [vmem:[#allocation5 + $0x360] sm:$0xff]
    %v221 = vld [vmem:[#allocation5 + $0x368] sm:$0xff]
    %v222 = vld [vmem:[#allocation5 + $0x370] sm:$0xff]
    %v223 = vld [vmem:[#allocation5 + $0x378] sm:$0xff]
    %v224 = vld [vmem:[#allocation5 + $0x380] sm:$0xff]
    %v225 = vld [vmem:[#allocation5 + $0x388] sm:$0xff]
    %v226 = vld [vmem:[#allocation5 + $0x390] sm:$0xff]
    %v227 = vld [vmem:[#allocation5 + $0x398] sm:$0xff]
    %v228 = vld [vmem:[#allocation5 + $0x3a0] sm:$0xff]
    %v229 = vld [vmem:[#allocation5 + $0x3a8] sm:$0xff]
    %v230 = vld [vmem:[#allocation5 + $0x3b0] sm:$0xff]
    %v231 = vld [vmem:[#allocation5 + $0x3b8] sm:$0xff]
    %v232 = vld [vmem:[#allocation5 + $0x3c0] sm:$0xff]
    %v233 = vld [vmem:[#allocation5 + $0x3c8] sm:$0xff]
    %v234 = vld [vmem:[#allocation5 + $0x3d0] sm:$0xff]
    %v235 = vld [vmem:[#allocation5 + $0x3d8] sm:$0xff]
    %v236 = vld [vmem:[#allocation5 + $0x3e0] sm:$0xff]
    %v237 = vld [vmem:[#allocation5 + $0x3e8] sm:$0xff]
    %v238 = vld [vmem:[#allocation5 + $0x3f0] sm:$0xff]
    %v239 = vld [vmem:[#allocation5 + $0x3f8] sm:$0xff]
    %v240 = vld [vmem:[#allocation5 + $0x400] sm:$0xff]
    %v241 = vld [vmem:[#allocation5 + $0x408] sm:$0xff]
    %v242 = vld [vmem:[#allocation5 + $0x410] sm:$0xff]
    %v243 = vld [vmem:[#allocation5 + $0x418] sm:$0xff]
    %v244 = vld [vmem:[#allocation5 + $0x420] sm:$0xff]
    %v245 = vld [vmem:[#allocation5 + $0x428] sm:$0xff]
    %v246 = vld [vmem:[#allocation5 + $0x430] sm:$0xff]
    %v247 = vld [vmem:[#allocation5 + $0x438] sm:$0xff]
    %v248 = vld [vmem:[#allocation5 + $0x440] sm:$0xff]
    %v249 = vld [vmem:[#allocation5 + $0x448] sm:$0xff]
    %v250 = vld [vmem:[#allocation5 + $0x450] sm:$0xff]
    %v251 = vld [vmem:[#allocation5 + $0x458] sm:$0xff]
    %v252 = vld [vmem:[#allocation5 + $0x460] sm:$0xff]
    %v253 = vld [vmem:[#allocation5 + $0x468] sm:$0xff]
    %v254 = vld [vmem:[#allocation5 + $0x470] sm:$0xff]
    %v255 = vld [vmem:[#allocation5 + $0x478] sm:$0xff]
    %v256 = vld [vmem:[#allocation5 + $0x480] sm:$0xff]
    %v257 = vld [vmem:[#allocation5 + $0x488] sm:$0xff]
    %v258 = vld [vmem:[#allocation5 + $0x490] sm:$0xff]
    %v259 = vld [vmem:[#allocation5 + $0x498] sm:$0xff]
    %v260 = vld [vmem:[#allocation5 + $0x4a0] sm:$0xff]
    %v261 = vld [vmem:[#allocation5 + $0x4a8] sm:$0xff]
    %v262 = vld [vmem:[#allocation5 + $0x4b0] sm:$0xff]
    %v263 = vld [vmem:[#allocation5 + $0x4b8] sm:$0xff]
    %v264 = vld [vmem:[#allocation5 + $0x4c0] sm:$0xff]
    %v265 = vld [vmem:[#allocation5 + $0x4c8] sm:$0xff]
    %v266 = vld [vmem:[#allocation5 + $0x4d0] sm:$0xff]
    %v267 = vld [vmem:[#allocation5 + $0x4d8] sm:$0xff]
    %v268 = vld [vmem:[#allocation5 + $0x4e0] sm:$0xff]
    %v269 = vld [vmem:[#allocation5 + $0x4e8] sm:$0xff]
    %v270 = vld [vmem:[#allocation5 + $0x4f0] sm:$0xff]
    %v271 = vld [vmem:[#allocation5 + $0x4f8] sm:$0xff]
    %v272 = vld [vmem:[#allocation5 + $0x500] sm:$0xff]
    %v273 = vld [vmem:[#allocation5 + $0x508] sm:$0xff]
    %v274 = vld [vmem:[#allocation5 + $0x510] sm:$0xff]
    %v275 = vld [vmem:[#allocation5 + $0x518] sm:$0xff]
    %v276 = vld [vmem:[#allocation5 + $0x520] sm:$0xff]
    %v277 = vld [vmem:[#allocation5 + $0x528] sm:$0xff]
    %v278 = vld [vmem:[#allocation5 + $0x530] sm:$0xff]
    %v279 = vld [vmem:[#allocation5 + $0x538] sm:$0xff]
    %v280 = vld [vmem:[#allocation5 + $0x540] sm:$0xff]
    %v281 = vld [vmem:[#allocation5 + $0x548] sm:$0xff]
    %v282 = vld [vmem:[#allocation5 + $0x550] sm:$0xff]
    %v283 = vld [vmem:[#allocation5 + $0x558] sm:$0xff]
    %v284 = vld [vmem:[#allocation5 + $0x560] sm:$0xff]
    %v285 = vld [vmem:[#allocation5 + $0x568] sm:$0xff]
    %v286 = vld [vmem:[#allocation5 + $0x570] sm:$0xff]
    %v287 = vld [vmem:[#allocation5 + $0x578] sm:$0xff]
    %v288 = vld [vmem:[#allocation5 + $0x580] sm:$0xff]
    %v289 = vld [vmem:[#allocation5 + $0x588] sm:$0xff]
    %v290 = vld [vmem:[#allocation5 + $0x590] sm:$0xff]
    %v291 = vld [vmem:[#allocation5 + $0x598] sm:$0xff]
    %v292 = vld [vmem:[#allocation5 + $0x5a0] sm:$0xff]
    %v293 = vld [vmem:[#allocation5 + $0x5a8] sm:$0xff]
    %v294 = vld [vmem:[#allocation5 + $0x5b0] sm:$0xff]
    %v295 = vld [vmem:[#allocation5 + $0x5b8] sm:$0xff]
    %v296 = vld [vmem:[#allocation5 + $0x5c0] sm:$0xff]
    %v297 = vld [vmem:[#allocation5 + $0x5c8] sm:$0xff]
    %v298 = vld [vmem:[#allocation5 + $0x5d0] sm:$0xff]
    %v299 = vld [vmem:[#allocation5 + $0x5d8] sm:$0xff]
    %v300 = vld [vmem:[#allocation5 + $0x5e0] sm:$0xff]
    %v301 = vld [vmem:[#allocation5 + $0x5e8] sm:$0xff]
    %v302 = vld [vmem:[#allocation5 + $0x5f0] sm:$0xff]
    %v303 = vld [vmem:[#allocation5 + $0x5f8] sm:$0xff]
    %v304 = vld [vmem:[#allocation5 + $0x600] sm:$0xff]
    %v305 = vld [vmem:[#allocation5 + $0x608] sm:$0xff]
    %v306 = vld [vmem:[#allocation5 + $0x610] sm:$0xff]
    %v307 = vld [vmem:[#allocation5 + $0x618] sm:$0xff]
    %v308 = vld [vmem:[%s2] sm:$0xf]
    %v310 = vlaneseq
    %v311 = vshrl.u32 %v310, 7
    %v312 = vsub.s32 0, %v311
    %v313 = vrot.slane %v308, %v312
    %v314 = vlaneseq
    %v315 = vshrl.u32 %v314, 7
    %v316 = vsub.s32 1, %v315
    %v317 = vrot.slane %v308, %v316
    %v318 = vlaneseq
    %v319 = vshrl.u32 %v318, 7
    %v320 = vsub.s32 2, %v319
    %v321 = vrot.slane %v308, %v320
    %v322 = vlaneseq
    %v323 = vshrl.u32 %v322, 7
    %v324 = vsub.s32 3, %v323
    %v325 = vrot.slane %v308, %v324
    %v526 = vunpack.c.l.b16 %v112
    %v527 = vunpack.c.h.b16 %v112
    %v528 = vunpack.c.l.b16 %v113
    %v529 = vunpack.c.h.b16 %v113
    %v530 = vunpack.c.l.b16 %v114
    %v531 = vunpack.c.h.b16 %v114
    %v532 = vunpack.c.l.b16 %v115
    %v533 = vunpack.c.h.b16 %v115
    %v534 = vunpack.c.l.b16 %v116
    %v535 = vunpack.c.h.b16 %v116
    %v536 = vunpack.c.l.b16 %v117
    %v537 = vunpack.c.h.b16 %v117
    %v538 = vunpack.c.l.b16 %v118
    %v539 = vunpack.c.h.b16 %v118
    %v540 = vunpack.c.l.b16 %v119
    %v541 = vunpack.c.h.b16 %v119
    %v542 = vunpack.c.l.b16 %v120
    %v543 = vunpack.c.h.b16 %v120
    %v544 = vunpack.c.l.b16 %v121
    %v545 = vunpack.c.h.b16 %v121
    %v546 = vunpack.c.l.b16 %v122
    %v547 = vunpack.c.h.b16 %v122
    %v548 = vunpack.c.l.b16 %v123
    %v549 = vunpack.c.h.b16 %v123
    %v550 = vunpack.c.l.b16 %v124
    %v551 = vunpack.c.h.b16 %v124
    %v552 = vunpack.c.l.b16 %v125
    %v553 = vunpack.c.h.b16 %v125
    %v554 = vunpack.c.l.b16 %v126
    %v555 = vunpack.c.h.b16 %v126
    %v556 = vunpack.c.l.b16 %v127
    %v557 = vunpack.c.h.b16 %v127
    %v558 = vunpack.c.l.b16 %v128
    %v559 = vunpack.c.h.b16 %v128
    %v560 = vunpack.c.l.b16 %v129
    %v561 = vunpack.c.h.b16 %v129
    %v562 = vunpack.c.l.b16 %v130
    %v563 = vunpack.c.h.b16 %v130
    %v564 = vunpack.c.l.b16 %v131
    %v565 = vunpack.c.h.b16 %v131
    %v566 = vunpack.c.l.b16 %v132
    %v567 = vunpack.c.h.b16 %v132
    %v568 = vunpack.c.l.b16 %v133
    %v569 = vunpack.c.h.b16 %v133
    %v570 = vunpack.c.l.b16 %v134
    %v571 = vunpack.c.h.b16 %v134
    %v572 = vunpack.c.l.b16 %v135
    %v573 = vunpack.c.h.b16 %v135
    %v574 = vunpack.c.l.b16 %v136
    %v575 = vunpack.c.h.b16 %v136
    %v576 = vunpack.c.l.b16 %v137
    %v577 = vunpack.c.h.b16 %v137
    %v578 = vunpack.c.l.b16 %v138
    %v579 = vunpack.c.h.b16 %v138
    %v580 = vunpack.c.l.b16 %v139
    %v581 = vunpack.c.h.b16 %v139
    %v582 = vunpack.c.l.b16 %v140
    %v583 = vunpack.c.h.b16 %v140
    %v584 = vunpack.c.l.b16 %v141
    %v585 = vunpack.c.h.b16 %v141
    %v586 = vunpack.c.l.b16 %v142
    %v587 = vunpack.c.h.b16 %v142
    %v588 = vunpack.c.l.b16 %v143
    %v589 = vunpack.c.h.b16 %v143
    %v590 = vunpack.c.l.b16 %v144
    %v591 = vunpack.c.h.b16 %v144
    %v592 = vunpack.c.l.b16 %v145
    %v593 = vunpack.c.h.b16 %v145
    %v594 = vunpack.c.l.b16 %v146
    %v595 = vunpack.c.h.b16 %v146
    %v596 = vunpack.c.l.b16 %v147
    %v597 = vunpack.c.h.b16 %v147
    %v598 = vunpack.c.l.b16 %v148
    %v599 = vunpack.c.h.b16 %v148
    %v600 = vunpack.c.l.b16 %v149
    %v601 = vunpack.c.h.b16 %v149
    %v602 = vunpack.c.l.b16 %v150
    %v603 = vunpack.c.h.b16 %v150
    %v604 = vunpack.c.l.b16 %v151
    %v605 = vunpack.c.h.b16 %v151
    %v606 = vunpack.c.l.b16 %v152
    %v607 = vunpack.c.h.b16 %v152
    %v608 = vunpack.c.l.b16 %v153
    %v609 = vunpack.c.h.b16 %v153
    %v610 = vunpack.c.l.b16 %v154
    %v611 = vunpack.c.h.b16 %v154
    %v612 = vunpack.c.l.b16 %v155
    %v613 = vunpack.c.h.b16 %v155
    %v614 = vunpack.c.l.b16 %v156
    %v615 = vunpack.c.h.b16 %v156
    %v616 = vunpack.c.l.b16 %v157
    %v617 = vunpack.c.h.b16 %v157
    %v618 = vunpack.c.l.b16 %v158
    %v619 = vunpack.c.h.b16 %v158
    %v620 = vunpack.c.l.b16 %v159
    %v621 = vunpack.c.h.b16 %v159
    %v622 = vunpack.c.l.b16 %v160
    %v623 = vunpack.c.h.b16 %v160
    %v624 = vunpack.c.l.b16 %v161
    %v625 = vunpack.c.h.b16 %v161
    %v626 = vunpack.c.l.b16 %v162
    %v627 = vunpack.c.h.b16 %v162
    %v628 = vunpack.c.l.b16 %v163
    %v629 = vunpack.c.h.b16 %v163
    %v630 = vunpack.c.l.b16 %v164
    %v631 = vunpack.c.h.b16 %v164
    %v632 = vunpack.c.l.b16 %v165
    %v633 = vunpack.c.h.b16 %v165
    %v634 = vunpack.c.l.b16 %v166
    %v635 = vunpack.c.h.b16 %v166
    %v636 = vunpack.c.l.b16 %v167
    %v637 = vunpack.c.h.b16 %v167
    %v638 = vunpack.c.l.b16 %v168
    %v639 = vunpack.c.h.b16 %v168
    %v640 = vunpack.c.l.b16 %v169
    %v641 = vunpack.c.h.b16 %v169
    %v642 = vunpack.c.l.b16 %v170
    %v643 = vunpack.c.h.b16 %v170
    %v644 = vunpack.c.l.b16 %v171
    %v645 = vunpack.c.h.b16 %v171
    %v646 = vunpack.c.l.b16 %v172
    %v647 = vunpack.c.h.b16 %v172
    %v648 = vunpack.c.l.b16 %v173
    %v649 = vunpack.c.h.b16 %v173
    %v650 = vunpack.c.l.b16 %v174
    %v651 = vunpack.c.h.b16 %v174
    %v652 = vunpack.c.l.b16 %v175
    %v653 = vunpack.c.h.b16 %v175
    %v654 = vunpack.c.l.b16 %v176
    %v655 = vunpack.c.h.b16 %v176
    %v656 = vunpack.c.l.b16 %v177
    %v657 = vunpack.c.h.b16 %v177
    %v658 = vunpack.c.l.b16 %v178
    %v659 = vunpack.c.h.b16 %v178
    %v660 = vunpack.c.l.b16 %v179
    %v661 = vunpack.c.h.b16 %v179
    %v662 = vunpack.c.l.b16 %v180
    %v663 = vunpack.c.h.b16 %v180
    %v664 = vunpack.c.l.b16 %v181
    %v665 = vunpack.c.h.b16 %v181
    %v666 = vunpack.c.l.b16 %v182
    %v667 = vunpack.c.h.b16 %v182
    %v668 = vunpack.c.l.b16 %v183
    %v669 = vunpack.c.h.b16 %v183
    %v670 = vunpack.c.l.b16 %v184
    %v671 = vunpack.c.h.b16 %v184
    %v672 = vunpack.c.l.b16 %v185
    %v673 = vunpack.c.h.b16 %v185
    %v674 = vunpack.c.l.b16 %v186
    %v675 = vunpack.c.h.b16 %v186
    %v676 = vunpack.c.l.b16 %v187
    %v677 = vunpack.c.h.b16 %v187
    %v678 = vunpack.c.l.b16 %v188
    %v679 = vunpack.c.h.b16 %v188
    %v680 = vunpack.c.l.b16 %v189
    %v681 = vunpack.c.h.b16 %v189
    %v682 = vunpack.c.l.b16 %v190
    %v683 = vunpack.c.h.b16 %v190
    %v684 = vunpack.c.l.b16 %v191
    %v685 = vunpack.c.h.b16 %v191
    %v686 = vunpack.c.l.b16 %v192
    %v687 = vunpack.c.h.b16 %v192
    %v688 = vunpack.c.l.b16 %v193
    %v689 = vunpack.c.h.b16 %v193
    %v690 = vunpack.c.l.b16 %v194
    %v691 = vunpack.c.h.b16 %v194
    %v692 = vunpack.c.l.b16 %v195
    %v693 = vunpack.c.h.b16 %v195
    %v694 = vunpack.c.l.b16 %v196
    %v695 = vunpack.c.h.b16 %v196
    %v696 = vunpack.c.l.b16 %v197
    %v697 = vunpack.c.h.b16 %v197
    %v698 = vunpack.c.l.b16 %v198
    %v699 = vunpack.c.h.b16 %v198
    %v700 = vunpack.c.l.b16 %v199
    %v701 = vunpack.c.h.b16 %v199
    %v702 = vunpack.c.l.b16 %v200
    %v703 = vunpack.c.h.b16 %v200
    %v704 = vunpack.c.l.b16 %v201
    %v705 = vunpack.c.h.b16 %v201
    %v706 = vunpack.c.l.b16 %v202
    %v707 = vunpack.c.h.b16 %v202
    %v708 = vunpack.c.l.b16 %v203
    %v709 = vunpack.c.h.b16 %v203
    %v710 = vunpack.c.l.b16 %v204
    %v711 = vunpack.c.h.b16 %v204
    %v712 = vunpack.c.l.b16 %v205
    %v713 = vunpack.c.h.b16 %v205
    %v714 = vunpack.c.l.b16 %v206
    %v715 = vunpack.c.h.b16 %v206
    %v716 = vunpack.c.l.b16 %v207
    %v717 = vunpack.c.h.b16 %v207
    %v718 = vunpack.c.l.b16 %v208
    %v719 = vunpack.c.h.b16 %v208
    %v720 = vunpack.c.l.b16 %v209
    %v721 = vunpack.c.h.b16 %v209
    %v722 = vunpack.c.l.b16 %v210
    %v723 = vunpack.c.h.b16 %v210
    %v724 = vunpack.c.l.b16 %v211
    %v725 = vunpack.c.h.b16 %v211
    %v726 = vunpack.c.l.b16 %v212
    %v727 = vunpack.c.h.b16 %v212
    %v728 = vunpack.c.l.b16 %v213
    %v729 = vunpack.c.h.b16 %v213
    %v730 = vunpack.c.l.b16 %v214
    %v731 = vunpack.c.h.b16 %v214
    %v732 = vunpack.c.l.b16 %v215
    %v733 = vunpack.c.h.b16 %v215
    %v734 = vunpack.c.l.b16 %v216
    %v735 = vunpack.c.h.b16 %v216
    %v736 = vunpack.c.l.b16 %v217
    %v737 = vunpack.c.h.b16 %v217
    %v738 = vunpack.c.l.b16 %v218
    %v739 = vunpack.c.h.b16 %v218
    %v740 = vunpack.c.l.b16 %v219
    %v741 = vunpack.c.h.b16 %v219
    %v742 = vunpack.c.l.b16 %v220
    %v743 = vunpack.c.h.b16 %v220
    %v744 = vunpack.c.l.b16 %v221
    %v745 = vunpack.c.h.b16 %v221
    %v746 = vunpack.c.l.b16 %v222
    %v747 = vunpack.c.h.b16 %v222
    %v748 = vunpack.c.l.b16 %v223
    %v749 = vunpack.c.h.b16 %v223
    %v750 = vunpack.c.l.b16 %v224
    %v751 = vunpack.c.h.b16 %v224
    %v752 = vunpack.c.l.b16 %v225
    %v753 = vunpack.c.h.b16 %v225
    %v754 = vunpack.c.l.b16 %v226
    %v755 = vunpack.c.h.b16 %v226
    %v756 = vunpack.c.l.b16 %v227
    %v757 = vunpack.c.h.b16 %v227
    %v758 = vunpack.c.l.b16 %v228
    %v759 = vunpack.c.h.b16 %v228
    %v760 = vunpack.c.l.b16 %v229
    %v761 = vunpack.c.h.b16 %v229
    %v762 = vunpack.c.l.b16 %v230
    %v763 = vunpack.c.h.b16 %v230
    %v764 = vunpack.c.l.b16 %v231
    %v765 = vunpack.c.h.b16 %v231
    %v766 = vunpack.c.l.b16 %v232
    %v767 = vunpack.c.h.b16 %v232
    %v768 = vunpack.c.l.b16 %v233
    %v769 = vunpack.c.h.b16 %v233
    %v770 = vunpack.c.l.b16 %v234
    %v771 = vunpack.c.h.b16 %v234
    %v772 = vunpack.c.l.b16 %v235
    %v773 = vunpack.c.h.b16 %v235
    %v774 = vunpack.c.l.b16 %v236
    %v775 = vunpack.c.h.b16 %v236
    %v776 = vunpack.c.l.b16 %v237
    %v777 = vunpack.c.h.b16 %v237
    %v778 = vunpack.c.l.b16 %v238
    %v779 = vunpack.c.h.b16 %v238
    %v780 = vunpack.c.l.b16 %v239
    %v781 = vunpack.c.h.b16 %v239
    %v782 = vunpack.c.l.b16 %v240
    %v783 = vunpack.c.h.b16 %v240
    %v784 = vunpack.c.l.b16 %v241
    %v785 = vunpack.c.h.b16 %v241
    %v786 = vunpack.c.l.b16 %v242
    %v787 = vunpack.c.h.b16 %v242
    %v788 = vunpack.c.l.b16 %v243
    %v789 = vunpack.c.h.b16 %v243
    %v790 = vunpack.c.l.b16 %v244
    %v791 = vunpack.c.h.b16 %v244
    %v792 = vunpack.c.l.b16 %v245
    %v793 = vunpack.c.h.b16 %v245
    %v794 = vunpack.c.l.b16 %v246
    %v795 = vunpack.c.h.b16 %v246
    %v796 = vunpack.c.l.b16 %v247
    %v797 = vunpack.c.h.b16 %v247
    %v798 = vunpack.c.l.b16 %v248
    %v799 = vunpack.c.h.b16 %v248
    %v800 = vunpack.c.l.b16 %v249
    %v801 = vunpack.c.h.b16 %v249
    %v802 = vunpack.c.l.b16 %v250
    %v803 = vunpack.c.h.b16 %v250
    %v804 = vunpack.c.l.b16 %v251
    %v805 = vunpack.c.h.b16 %v251
    %v806 = vunpack.c.l.b16 %v252
    %v807 = vunpack.c.h.b16 %v252
    %v808 = vunpack.c.l.b16 %v253
    %v809 = vunpack.c.h.b16 %v253
    %v810 = vunpack.c.l.b16 %v254
    %v811 = vunpack.c.h.b16 %v254
    %v812 = vunpack.c.l.b16 %v255
    %v813 = vunpack.c.h.b16 %v255
    %v814 = vunpack.c.l.b16 %v256
    %v815 = vunpack.c.h.b16 %v256
    %v816 = vunpack.c.l.b16 %v257
    %v817 = vunpack.c.h.b16 %v257
    %v818 = vunpack.c.l.b16 %v258
    %v819 = vunpack.c.h.b16 %v258
    %v820 = vunpack.c.l.b16 %v259
    %v821 = vunpack.c.h.b16 %v259
    %v822 = vunpack.c.l.b16 %v260
    %v823 = vunpack.c.h.b16 %v260
    %v824 = vunpack.c.l.b16 %v261
    %v825 = vunpack.c.h.b16 %v261
    %v826 = vunpack.c.l.b16 %v262
    %v827 = vunpack.c.h.b16 %v262
    %v828 = vunpack.c.l.b16 %v263
    %v829 = vunpack.c.h.b16 %v263
    %v830 = vunpack.c.l.b16 %v264
    %v831 = vunpack.c.h.b16 %v264
    %v832 = vunpack.c.l.b16 %v265
    %v833 = vunpack.c.h.b16 %v265
    %v834 = vunpack.c.l.b16 %v266
    %v835 = vunpack.c.h.b16 %v266
    %v836 = vunpack.c.l.b16 %v267
    %v837 = vunpack.c.h.b16 %v267
    %v838 = vunpack.c.l.b16 %v268
    %v839 = vunpack.c.h.b16 %v268
    %v840 = vunpack.c.l.b16 %v269
    %v841 = vunpack.c.h.b16 %v269
    %v842 = vunpack.c.l.b16 %v270
    %v843 = vunpack.c.h.b16 %v270
    %v844 = vunpack.c.l.b16 %v271
    %v845 = vunpack.c.h.b16 %v271
    %v846 = vunpack.c.l.b16 %v272
    %v847 = vunpack.c.h.b16 %v272
    %v848 = vunpack.c.l.b16 %v273
    %v849 = vunpack.c.h.b16 %v273
    %v850 = vunpack.c.l.b16 %v274
    %v851 = vunpack.c.h.b16 %v274
    %v852 = vunpack.c.l.b16 %v275
    %v853 = vunpack.c.h.b16 %v275
    %v854 = vunpack.c.l.b16 %v276
    %v855 = vunpack.c.h.b16 %v276
    %v856 = vunpack.c.l.b16 %v277
    %v857 = vunpack.c.h.b16 %v277
    %v858 = vunpack.c.l.b16 %v278
    %v859 = vunpack.c.h.b16 %v278
    %v860 = vunpack.c.l.b16 %v279
    %v861 = vunpack.c.h.b16 %v279
    %v862 = vunpack.c.l.b16 %v280
    %v863 = vunpack.c.h.b16 %v280
    %v864 = vunpack.c.l.b16 %v281
    %v865 = vunpack.c.h.b16 %v281
    %v866 = vunpack.c.l.b16 %v282
    %v867 = vunpack.c.h.b16 %v282
    %v868 = vunpack.c.l.b16 %v283
    %v869 = vunpack.c.h.b16 %v283
    %v870 = vunpack.c.l.b16 %v284
    %v871 = vunpack.c.h.b16 %v284
    %v872 = vunpack.c.l.b16 %v285
    %v873 = vunpack.c.h.b16 %v285
    %v874 = vunpack.c.l.b16 %v286
    %v875 = vunpack.c.h.b16 %v286
    %v876 = vunpack.c.l.b16 %v287
    %v877 = vunpack.c.h.b16 %v287
    %v878 = vunpack.c.l.b16 %v288
    %v879 = vunpack.c.h.b16 %v288
    %v880 = vunpack.c.l.b16 %v289
    %v881 = vunpack.c.h.b16 %v289
    %v882 = vunpack.c.l.b16 %v290
    %v883 = vunpack.c.h.b16 %v290
    %v884 = vunpack.c.l.b16 %v291
    %v885 = vunpack.c.h.b16 %v291
    %v886 = vunpack.c.l.b16 %v292
    %v887 = vunpack.c.h.b16 %v292
    %v888 = vunpack.c.l.b16 %v293
    %v889 = vunpack.c.h.b16 %v293
    %v890 = vunpack.c.l.b16 %v294
    %v891 = vunpack.c.h.b16 %v294
    %v892 = vunpack.c.l.b16 %v295
    %v893 = vunpack.c.h.b16 %v295
    %v894 = vunpack.c.l.b16 %v296
    %v895 = vunpack.c.h.b16 %v296
    %v896 = vunpack.c.l.b16 %v297
    %v897 = vunpack.c.h.b16 %v297
    %v898 = vunpack.c.l.b16 %v298
    %v899 = vunpack.c.h.b16 %v298
    %v900 = vunpack.c.l.b16 %v299
    %v901 = vunpack.c.h.b16 %v299
    %v902 = vunpack.c.l.b16 %v300
    %v903 = vunpack.c.h.b16 %v300
    %v904 = vunpack.c.l.b16 %v301
    %v905 = vunpack.c.h.b16 %v301
    %v906 = vunpack.c.l.b16 %v302
    %v907 = vunpack.c.h.b16 %v302
    %v908 = vunpack.c.l.b16 %v303
    %v909 = vunpack.c.h.b16 %v303
    %v910 = vunpack.c.l.b16 %v304
    %v911 = vunpack.c.h.b16 %v304
    %v912 = vunpack.c.l.b16 %v305
    %v913 = vunpack.c.h.b16 %v305
    %v914 = vunpack.c.l.b16 %v306
    %v915 = vunpack.c.h.b16 %v306
    %v916 = vunpack.c.l.b16 %v307
    %v917 = vunpack.c.h.b16 %v307
    %v918 = vpack.c.b16 %v530, %v526
    %v919 = vpack.c.b16 %v531, %v527
    %v920 = vpack.c.b16 %v532, %v528
    %v921 = vpack.c.b16 %v533, %v529
    %v922 = vpack.c.b16 %v538, %v534
    %v923 = vpack.c.b16 %v539, %v535
    %v924 = vpack.c.b16 %v540, %v536
    %v925 = vpack.c.b16 %v541, %v537
    %v926 = vpack.c.b16 %v546, %v542
    %v927 = vpack.c.b16 %v547, %v543
    %v928 = vpack.c.b16 %v548, %v544
    %v929 = vpack.c.b16 %v549, %v545
    %v930 = vpack.c.b16 %v554, %v550
    %v931 = vpack.c.b16 %v555, %v551
    %v932 = vpack.c.b16 %v556, %v552
    %v933 = vpack.c.b16 %v557, %v553
    %v934 = vpack.c.b16 %v562, %v558
    %v935 = vpack.c.b16 %v563, %v559
    %v936 = vpack.c.b16 %v564, %v560
    %v937 = vpack.c.b16 %v565, %v561
    %v938 = vpack.c.b16 %v570, %v566
    %v939 = vpack.c.b16 %v571, %v567
    %v940 = vpack.c.b16 %v572, %v568
    %v941 = vpack.c.b16 %v573, %v569
    %v942 = vpack.c.b16 %v578, %v574
    %v943 = vpack.c.b16 %v579, %v575
    %v944 = vpack.c.b16 %v580, %v576
    %v945 = vpack.c.b16 %v581, %v577
    %v946 = vpack.c.b16 %v586, %v582
    %v947 = vpack.c.b16 %v587, %v583
    %v948 = vpack.c.b16 %v588, %v584
    %v949 = vpack.c.b16 %v589, %v585
    %v950 = vpack.c.b16 %v594, %v590
    %v951 = vpack.c.b16 %v595, %v591
    %v952 = vpack.c.b16 %v596, %v592
    %v953 = vpack.c.b16 %v597, %v593
    %v954 = vpack.c.b16 %v602, %v598
    %v955 = vpack.c.b16 %v603, %v599
    %v956 = vpack.c.b16 %v604, %v600
    %v957 = vpack.c.b16 %v605, %v601
    %v958 = vpack.c.b16 %v610, %v606
    %v959 = vpack.c.b16 %v611, %v607
    %v960 = vpack.c.b16 %v612, %v608
    %v961 = vpack.c.b16 %v613, %v609
    %v962 = vpack.c.b16 %v618, %v614
    %v963 = vpack.c.b16 %v619, %v615
    %v964 = vpack.c.b16 %v620, %v616
    %v965 = vpack.c.b16 %v621, %v617
    %v966 = vpack.c.b16 %v626, %v622
    %v967 = vpack.c.b16 %v627, %v623
    %v968 = vpack.c.b16 %v628, %v624
    %v969 = vpack.c.b16 %v629, %v625
    %v970 = vpack.c.b16 %v634, %v630
    %v971 = vpack.c.b16 %v635, %v631
    %v972 = vpack.c.b16 %v636, %v632
    %v973 = vpack.c.b16 %v637, %v633
    %v974 = vpack.c.b16 %v642, %v638
    %v975 = vpack.c.b16 %v643, %v639
    %v976 = vpack.c.b16 %v644, %v640
    %v977 = vpack.c.b16 %v645, %v641
    %v978 = vpack.c.b16 %v650, %v646
    %v979 = vpack.c.b16 %v651, %v647
    %v980 = vpack.c.b16 %v652, %v648
    %v981 = vpack.c.b16 %v653, %v649
    %v982 = vpack.c.b16 %v658, %v654
    %v983 = vpack.c.b16 %v659, %v655
    %v984 = vpack.c.b16 %v660, %v656
    %v985 = vpack.c.b16 %v661, %v657
    %v986 = vpack.c.b16 %v666, %v662
    %v987 = vpack.c.b16 %v667, %v663
    %v988 = vpack.c.b16 %v668, %v664
    %v989 = vpack.c.b16 %v669, %v665
    %v990 = vpack.c.b16 %v674, %v670
    %v991 = vpack.c.b16 %v675, %v671
    %v992 = vpack.c.b16 %v676, %v672
    %v993 = vpack.c.b16 %v677, %v673
    %v994 = vpack.c.b16 %v682, %v678
    %v995 = vpack.c.b16 %v683, %v679
    %v996 = vpack.c.b16 %v684, %v680
    %v997 = vpack.c.b16 %v685, %v681
    %v998 = vpack.c.b16 %v690, %v686
    %v999 = vpack.c.b16 %v691, %v687
    %v1000 = vpack.c.b16 %v692, %v688
    %v1001 = vpack.c.b16 %v693, %v689
    %v1002 = vpack.c.b16 %v698, %v694
    %v1003 = vpack.c.b16 %v699, %v695
    %v1004 = vpack.c.b16 %v700, %v696
    %v1005 = vpack.c.b16 %v701, %v697
    %v1006 = vpack.c.b16 %v706, %v702
    %v1007 = vpack.c.b16 %v707, %v703
    %v1008 = vpack.c.b16 %v708, %v704
    %v1009 = vpack.c.b16 %v709, %v705
    %v1010 = vpack.c.b16 %v714, %v710
    %v1011 = vpack.c.b16 %v715, %v711
    %v1012 = vpack.c.b16 %v716, %v712
    %v1013 = vpack.c.b16 %v717, %v713
    %v1014 = vpack.c.b16 %v722, %v718
    %v1015 = vpack.c.b16 %v723, %v719
    %v1016 = vpack.c.b16 %v724, %v720
    %v1017 = vpack.c.b16 %v725, %v721
    %v1018 = vpack.c.b16 %v730, %v726
    %v1019 = vpack.c.b16 %v731, %v727
    %v1020 = vpack.c.b16 %v732, %v728
    %v1021 = vpack.c.b16 %v733, %v729
    %v1022 = vpack.c.b16 %v738, %v734
    %v1023 = vpack.c.b16 %v739, %v735
    %v1024 = vpack.c.b16 %v740, %v736
    %v1025 = vpack.c.b16 %v741, %v737
    %v1026 = vpack.c.b16 %v746, %v742
    %v1027 = vpack.c.b16 %v747, %v743
    %v1028 = vpack.c.b16 %v748, %v744
    %v1029 = vpack.c.b16 %v749, %v745
    %v1030 = vpack.c.b16 %v754, %v750
    %v1031 = vpack.c.b16 %v755, %v751
    %v1032 = vpack.c.b16 %v756, %v752
    %v1033 = vpack.c.b16 %v757, %v753
    %v1034 = vpack.c.b16 %v762, %v758
    %v1035 = vpack.c.b16 %v763, %v759
    %v1036 = vpack.c.b16 %v764, %v760
    %v1037 = vpack.c.b16 %v765, %v761
    %v1038 = vpack.c.b16 %v770, %v766
    %v1039 = vpack.c.b16 %v771, %v767
    %v1040 = vpack.c.b16 %v772, %v768
    %v1041 = vpack.c.b16 %v773, %v769
    %v1042 = vpack.c.b16 %v778, %v774
    %v1043 = vpack.c.b16 %v779, %v775
    %v1044 = vpack.c.b16 %v780, %v776
    %v1045 = vpack.c.b16 %v781, %v777
    %v1046 = vpack.c.b16 %v786, %v782
    %v1047 = vpack.c.b16 %v787, %v783
    %v1048 = vpack.c.b16 %v788, %v784
    %v1049 = vpack.c.b16 %v789, %v785
    %v1050 = vpack.c.b16 %v794, %v790
    %v1051 = vpack.c.b16 %v795, %v791
    %v1052 = vpack.c.b16 %v796, %v792
    %v1053 = vpack.c.b16 %v797, %v793
    %v1054 = vpack.c.b16 %v802, %v798
    %v1055 = vpack.c.b16 %v803, %v799
    %v1056 = vpack.c.b16 %v804, %v800
    %v1057 = vpack.c.b16 %v805, %v801
    %v1058 = vpack.c.b16 %v810, %v806
    %v1059 = vpack.c.b16 %v811, %v807
    %v1060 = vpack.c.b16 %v812, %v808
    %v1061 = vpack.c.b16 %v813, %v809
    %v1062 = vpack.c.b16 %v818, %v814
    %v1063 = vpack.c.b16 %v819, %v815
    %v1064 = vpack.c.b16 %v820, %v816
    %v1065 = vpack.c.b16 %v821, %v817
    %v1066 = vpack.c.b16 %v826, %v822
    %v1067 = vpack.c.b16 %v827, %v823
    %v1068 = vpack.c.b16 %v828, %v824
    %v1069 = vpack.c.b16 %v829, %v825
    %v1070 = vpack.c.b16 %v834, %v830
    %v1071 = vpack.c.b16 %v835, %v831
    %v1072 = vpack.c.b16 %v836, %v832
    %v1073 = vpack.c.b16 %v837, %v833
    %v1074 = vpack.c.b16 %v842, %v838
    %v1075 = vpack.c.b16 %v843, %v839
    %v1076 = vpack.c.b16 %v844, %v840
    %v1077 = vpack.c.b16 %v845, %v841
    %v1078 = vpack.c.b16 %v850, %v846
    %v1079 = vpack.c.b16 %v851, %v847
    %v1080 = vpack.c.b16 %v852, %v848
    %v1081 = vpack.c.b16 %v853, %v849
    %v1082 = vpack.c.b16 %v858, %v854
    %v1083 = vpack.c.b16 %v859, %v855
    %v1084 = vpack.c.b16 %v860, %v856
    %v1085 = vpack.c.b16 %v861, %v857
    %v1086 = vpack.c.b16 %v866, %v862
    %v1087 = vpack.c.b16 %v867, %v863
    %v1088 = vpack.c.b16 %v868, %v864
    %v1089 = vpack.c.b16 %v869, %v865
    %v1090 = vpack.c.b16 %v874, %v870
    %v1091 = vpack.c.b16 %v875, %v871
    %v1092 = vpack.c.b16 %v876, %v872
    %v1093 = vpack.c.b16 %v877, %v873
    %v1094 = vpack.c.b16 %v882, %v878
    %v1095 = vpack.c.b16 %v883, %v879
    %v1096 = vpack.c.b16 %v884, %v880
    %v1097 = vpack.c.b16 %v885, %v881
    %v1098 = vpack.c.b16 %v890, %v886
    %v1099 = vpack.c.b16 %v891, %v887
    %v1100 = vpack.c.b16 %v892, %v888
    %v1101 = vpack.c.b16 %v893, %v889
    %v1102 = vpack.c.b16 %v898, %v894
    %v1103 = vpack.c.b16 %v899, %v895
    %v1104 = vpack.c.b16 %v900, %v896
    %v1105 = vpack.c.b16 %v901, %v897
    %v1106 = vpack.c.b16 %v906, %v902
    %v1107 = vpack.c.b16 %v907, %v903
    %v1108 = vpack.c.b16 %v908, %v904
    %v1109 = vpack.c.b16 %v909, %v905
    %v1110 = vpack.c.b16 %v914, %v910
    %v1111 = vpack.c.b16 %v915, %v911
    %v1112 = vpack.c.b16 %v916, %v912
    %v1113 = vpack.c.b16 %v917, %v913
    %vm1310 = vcmask 130048
    %v1312 = vsel %vm1310, %v111, 0
    %1314 = vmatprep.subr.bf16.mxu0 %v919
    %1315 = vmatpush1.bf16.msra.mxu0 %v918
    %1316 = vmatprep.subr.bf16.mxu0 %v923
    %1317 = vmatpush1.bf16.msra.mxu0 %v922
    %1318 = vmatprep.subr.bf16.mxu0 %v927
    %1319 = vmatpush1.bf16.msra.mxu0 %v926
    %1320 = vmatprep.subr.bf16.mxu0 %v931
    %1321 = vmatpush1.bf16.msra.mxu0 %v930
    %1322 = vmatprep.subr.bf16.mxu0 %v935
    %1323 = vmatpush1.bf16.msra.mxu0 %v934
    %1324 = vmatprep.subr.bf16.mxu0 %v939
    %1325 = vmatpush1.bf16.msra.mxu0 %v938
    %1326 = vmatprep.subr.bf16.mxu0 %v943
    %1327 = vmatpush1.bf16.msra.mxu0 %v942
    %1328 = vmatprep.subr.bf16.mxu0 %v947
    %1329 = vmatpush1.bf16.msra.mxu0 %v946
    %1330 = vmatprep.subr.bf16.mxu0 %v951
    %1331 = vmatpush1.bf16.msra.mxu0 %v950
    %1332 = vmatprep.subr.bf16.mxu0 %v955
    %1333 = vmatpush1.bf16.msra.mxu0 %v954
    %1334 = vmatprep.subr.bf16.mxu0 %v959
    %1335 = vmatpush1.bf16.msra.mxu0 %v958
    %1336 = vmatprep.subr.bf16.mxu0 %v963
    %1337 = vmatpush1.bf16.msra.mxu0 %v962
    %1338 = vmatprep.subr.bf16.mxu0 %v967
    %1339 = vmatpush1.bf16.msra.mxu0 %v966
    %1340 = vmatprep.subr.bf16.mxu0 %v971
    %1341 = vmatpush1.bf16.msra.mxu0 %v970
    %1342 = vmatprep.subr.bf16.mxu0 %v975
    %1343 = vmatpush1.bf16.msra.mxu0 %v974
    %1344 = vmatprep.subr.bf16.mxu0 %v979
    %1345 = vmatpush1.bf16.msra.mxu0 %v978
    %1346 = vmatprep.mubr.bf16.mxu0 %v106
    %1347 = vmatmul.mubr.bf16.gmra.mrb[0].mxu0 %v105
    %v1348 = vpop.f32.mrb[0].mxu0
    %v1349 = vadd.f32 %v313, %v1348
    %v1350 = vpop.f32.mrb[0].mxu0
    %v1351 = vadd.f32 %v317, %v1350
    %v1352 = vpop.f32.mrb[0].mxu0
    %v1353 = vpop.f32.mrb[0].mxu0
    %1354 = vdwg.mxu0
    %1355 = vmatprep.subr.bf16.mxu0 %v983
    %1356 = vmatpush1.bf16.msra.mxu0 %v982
    %1357 = vmatprep.subr.bf16.mxu0 %v987
    %1358 = vmatpush1.bf16.msra.mxu0 %v986
    %1359 = vmatprep.subr.bf16.mxu0 %v991
    %1360 = vmatpush1.bf16.msra.mxu0 %v990
    %1361 = vmatprep.subr.bf16.mxu0 %v995
    %1362 = vmatpush1.bf16.msra.mxu0 %v994
    %1363 = vmatprep.subr.bf16.mxu0 %v999
    %1364 = vmatpush1.bf16.msra.mxu0 %v998
    %1365 = vmatprep.subr.bf16.mxu0 %v1003
    %1366 = vmatpush1.bf16.msra.mxu0 %v1002
    %1367 = vmatprep.subr.bf16.mxu0 %v1007
    %1368 = vmatpush1.bf16.msra.mxu0 %v1006
    %1369 = vmatprep.subr.bf16.mxu0 %v1011
    %1370 = vmatpush1.bf16.msra.mxu0 %v1010
    %1371 = vmatprep.subr.bf16.mxu0 %v1015
    %1372 = vmatpush1.bf16.msra.mxu0 %v1014
    %1373 = vmatprep.subr.bf16.mxu0 %v1019
    %1374 = vmatpush1.bf16.msra.mxu0 %v1018
    %1375 = vmatprep.subr.bf16.mxu0 %v1023
    %1376 = vmatpush1.bf16.msra.mxu0 %v1022
    %1377 = vmatprep.subr.bf16.mxu0 %v1027
    %1378 = vmatpush1.bf16.msra.mxu0 %v1026
    %1379 = vmatprep.subr.bf16.mxu0 %v1031
    %1380 = vmatpush1.bf16.msra.mxu0 %v1030
    %1381 = vmatprep.subr.bf16.mxu0 %v1035
    %1382 = vmatpush1.bf16.msra.mxu0 %v1034
    %1383 = vmatprep.subr.bf16.mxu0 %v1039
    %1384 = vmatpush1.bf16.msra.mxu0 %v1038
    %1385 = vmatprep.subr.bf16.mxu0 %v1043
    %1386 = vmatpush1.bf16.msra.mxu0 %v1042
    %1387 = vmatprep.mubr.bf16.mxu0 %v108
    %1388 = vmatmul.mubr.bf16.gmra.mrb[0].mxu0 %v107
    %v1389 = vpop.f32.mrb[0].mxu0
    %v1390 = vadd.f32 %v1349, %v1389
    %v1391 = vpop.f32.mrb[0].mxu0
    %v1392 = vadd.f32 %v1351, %v1391
    %v1393 = vpop.f32.mrb[0].mxu0
    %v1394 = vpop.f32.mrb[0].mxu0
    %1395 = vdwg.mxu0
    %1396 = vmatprep.subr.bf16.mxu0 %v1047
    %1397 = vmatpush1.bf16.msra.mxu0 %v1046
    %1398 = vmatprep.subr.bf16.mxu0 %v1051
    %1399 = vmatpush1.bf16.msra.mxu0 %v1050
    %1400 = vmatprep.subr.bf16.mxu0 %v1055
    %1401 = vmatpush1.bf16.msra.mxu0 %v1054
    %1402 = vmatprep.subr.bf16.mxu0 %v1059
    %1403 = vmatpush1.bf16.msra.mxu0 %v1058
    %1404 = vmatprep.subr.bf16.mxu0 %v1063
    %1405 = vmatpush1.bf16.msra.mxu0 %v1062
    %1406 = vmatprep.subr.bf16.mxu0 %v1067
    %1407 = vmatpush1.bf16.msra.mxu0 %v1066
    %1408 = vmatprep.subr.bf16.mxu0 %v1071
    %1409 = vmatpush1.bf16.msra.mxu0 %v1070
    %1410 = vmatprep.subr.bf16.mxu0 %v1075
    %1411 = vmatpush1.bf16.msra.mxu0 %v1074
    %1412 = vmatprep.subr.bf16.mxu0 %v1079
    %1413 = vmatpush1.bf16.msra.mxu0 %v1078
    %1414 = vmatprep.subr.bf16.mxu0 %v1083
    %1415 = vmatpush1.bf16.msra.mxu0 %v1082
    %1416 = vmatprep.subr.bf16.mxu0 %v1087
    %1417 = vmatpush1.bf16.msra.mxu0 %v1086
    %1418 = vmatprep.subr.bf16.mxu0 %v1091
    %1419 = vmatpush1.bf16.msra.mxu0 %v1090
    %1420 = vmatprep.subr.bf16.mxu0 %v1095
    %1421 = vmatpush1.bf16.msra.mxu0 %v1094
    %1422 = vmatprep.subr.bf16.mxu0 %v1099
    %1423 = vmatpush1.bf16.msra.mxu0 %v1098
    %1424 = vmatprep.subr.bf16.mxu0 %v1103
    %1425 = vmatpush1.bf16.msra.mxu0 %v1102
    %1426 = vmatprep.subr.bf16.mxu0 %v1107
    %1427 = vmatpush1.bf16.msra.mxu0 %v1106
    %1428 = vmatprep.mubr.bf16.mxu0 %v110
    %1429 = vmatmul.mubr.bf16.gmra.mrb[0].mxu0 %v109
    %v1430 = vpop.f32.mrb[0].mxu0
    %v1431 = vadd.f32 %v1390, %v1430
    %v1432 = vpop.f32.mrb[0].mxu0
    %v1433 = vadd.f32 %v1392, %v1432
    %v1434 = vpop.f32.mrb[0].mxu0
    %v1435 = vpop.f32.mrb[0].mxu0
    %1436 = vdwg.mxu0
    %1437 = vmatprep.subr.bf16.mxu0 %v1111
    %1438 = vmatpush1.bf16.msra.mxu0 %v1110
    %1439 = vmatprep.subr.bf16.mxu0 0
    %1440 = vmatpush1.bf16.msra.mxu0 0
    %1441 = vmatprep.subr.bf16.mxu0 0
    %1442 = vmatpush1.bf16.msra.mxu0 0
    %1443 = vmatprep.subr.bf16.mxu0 0
    %1444 = vmatpush1.bf16.msra.mxu0 0
    %1445 = vmatprep.subr.bf16.mxu0 0
    %1446 = vmatpush1.bf16.msra.mxu0 0
    %1447 = vmatprep.subr.bf16.mxu0 0
    %1448 = vmatpush1.bf16.msra.mxu0 0
    %1449 = vmatprep.subr.bf16.mxu0 0
    %1450 = vmatpush1.bf16.msra.mxu0 0
    %1451 = vmatprep.subr.bf16.mxu0 0
    %1452 = vmatpush1.bf16.msra.mxu0 0
    %1453 = vmatprep.subr.bf16.mxu0 0
    %1454 = vmatpush1.bf16.msra.mxu0 0
    %1455 = vmatprep.subr.bf16.mxu0 0
    %1456 = vmatpush1.bf16.msra.mxu0 0
    %1457 = vmatprep.subr.bf16.mxu0 0
    %1458 = vmatpush1.bf16.msra.mxu0 0
    %1459 = vmatprep.subr.bf16.mxu0 0
    %1460 = vmatpush1.bf16.msra.mxu0 0
    %1461 = vmatprep.subr.bf16.mxu0 0
    %1462 = vmatpush1.bf16.msra.mxu0 0
    %1463 = vmatprep.subr.bf16.mxu0 0
    %1464 = vmatpush1.bf16.msra.mxu0 0
    %1465 = vmatprep.subr.bf16.mxu0 0
    %1466 = vmatpush1.bf16.msra.mxu0 0
    %1467 = vmatprep.subr.bf16.mxu0 0
    %1468 = vmatpush1.bf16.msra.mxu0 0
    %1469 = vmatprep.mubr.bf16.mxu0 0
    %1470 = vmatmul.mubr.bf16.gmra.mrb[0].mxu0 %v1312
    %v1471 = vpop.f32.mrb[0].mxu0
    %v1472 = vadd.f32 %v1431, %v1471
    %v1473 = vpop.f32.mrb[0].mxu0
    %v1474 = vadd.f32 %v1433, %v1473
    %v1475 = vpop.f32.mrb[0].mxu0
    %v1476 = vpop.f32.mrb[0].mxu0
    %1477 = vdwg.mxu0
    %1478 = vmatprep.subr.bf16.mxu0 %v921
    %1479 = vmatpush1.bf16.msra.mxu0 %v920
    %1480 = vmatprep.subr.bf16.mxu0 %v925
    %1481 = vmatpush1.bf16.msra.mxu0 %v924
    %1482 = vmatprep.subr.bf16.mxu0 %v929
    %1483 = vmatpush1.bf16.msra.mxu0 %v928
    %1484 = vmatprep.subr.bf16.mxu0 %v933
    %1485 = vmatpush1.bf16.msra.mxu0 %v932
    %1486 = vmatprep.subr.bf16.mxu0 %v937
    %1487 = vmatpush1.bf16.msra.mxu0 %v936
    %1488 = vmatprep.subr.bf16.mxu0 %v941
    %1489 = vmatpush1.bf16.msra.mxu0 %v940
    %1490 = vmatprep.subr.bf16.mxu0 %v945
    %1491 = vmatpush1.bf16.msra.mxu0 %v944
    %1492 = vmatprep.subr.bf16.mxu0 %v949
    %1493 = vmatpush1.bf16.msra.mxu0 %v948
    %1494 = vmatprep.subr.bf16.mxu0 %v953
    %1495 = vmatpush1.bf16.msra.mxu0 %v952
    %1496 = vmatprep.subr.bf16.mxu0 %v957
    %1497 = vmatpush1.bf16.msra.mxu0 %v956
    %1498 = vmatprep.subr.bf16.mxu0 %v961
    %1499 = vmatpush1.bf16.msra.mxu0 %v960
    %1500 = vmatprep.subr.bf16.mxu0 %v965
    %1501 = vmatpush1.bf16.msra.mxu0 %v964
    %1502 = vmatprep.subr.bf16.mxu0 %v969
    %1503 = vmatpush1.bf16.msra.mxu0 %v968
    %1504 = vmatprep.subr.bf16.mxu0 %v973
    %1505 = vmatpush1.bf16.msra.mxu0 %v972
    %1506 = vmatprep.subr.bf16.mxu0 %v977
    %1507 = vmatpush1.bf16.msra.mxu0 %v976
    %1508 = vmatprep.subr.bf16.mxu0 %v981
    %1509 = vmatpush1.bf16.msra.mxu0 %v980
    %1510 = vmatprep.mubr.bf16.mxu0 %v106
    %1511 = vmatmul.mubr.bf16.gmra.mrb[0].mxu0 %v105
    %v1512 = vpop.f32.mrb[0].mxu0
    %v1513 = vadd.f32 %v321, %v1512
    %v1514 = vpop.f32.mrb[0].mxu0
    %v1515 = vadd.f32 %v325, %v1514
    %v1516 = vpop.f32.mrb[0].mxu0
    %v1517 = vpop.f32.mrb[0].mxu0
    %1518 = vdwg.mxu0
    %1519 = vmatprep.subr.bf16.mxu0 %v985
    %1520 = vmatpush1.bf16.msra.mxu0 %v984
    %1521 = vmatprep.subr.bf16.mxu0 %v989
    %1522 = vmatpush1.bf16.msra.mxu0 %v988
    %1523 = vmatprep.subr.bf16.mxu0 %v993
    %1524 = vmatpush1.bf16.msra.mxu0 %v992
    %1525 = vmatprep.subr.bf16.mxu0 %v997
    %1526 = vmatpush1.bf16.msra.mxu0 %v996
    %1527 = vmatprep.subr.bf16.mxu0 %v1001
    %1528 = vmatpush1.bf16.msra.mxu0 %v1000
    %1529 = vmatprep.subr.bf16.mxu0 %v1005
    %1530 = vmatpush1.bf16.msra.mxu0 %v1004
    %1531 = vmatprep.subr.bf16.mxu0 %v1009
    %1532 = vmatpush1.bf16.msra.mxu0 %v1008
    %1533 = vmatprep.subr.bf16.mxu0 %v1013
    %1534 = vmatpush1.bf16.msra.mxu0 %v1012
    %1535 = vmatprep.subr.bf16.mxu0 %v1017
    %1536 = vmatpush1.bf16.msra.mxu0 %v1016
    %1537 = vmatprep.subr.bf16.mxu0 %v1021
    %1538 = vmatpush1.bf16.msra.mxu0 %v1020
    %1539 = vmatprep.subr.bf16.mxu0 %v1025
    %1540 = vmatpush1.bf16.msra.mxu0 %v1024
    %1541 = vmatprep.subr.bf16.mxu0 %v1029
    %1542 = vmatpush1.bf16.msra.mxu0 %v1028
    %1543 = vmatprep.subr.bf16.mxu0 %v1033
    %1544 = vmatpush1.bf16.msra.mxu0 %v1032
    %1545 = vmatprep.subr.bf16.mxu0 %v1037
    %1546 = vmatpush1.bf16.msra.mxu0 %v1036
    %1547 = vmatprep.subr.bf16.mxu0 %v1041
    %1548 = vmatpush1.bf16.msra.mxu0 %v1040
    %1549 = vmatprep.subr.bf16.mxu0 %v1045
    %1550 = vmatpush1.bf16.msra.mxu0 %v1044
    %1551 = vmatprep.mubr.bf16.mxu0 %v108
    %1552 = vmatmul.mubr.bf16.gmra.mrb[0].mxu0 %v107
    %v1553 = vpop.f32.mrb[0].mxu0
    %v1554 = vadd.f32 %v1513, %v1553
    %v1555 = vpop.f32.mrb[0].mxu0
    %v1556 = vadd.f32 %v1515, %v1555
    %v1557 = vpop.f32.mrb[0].mxu0
    %v1558 = vpop.f32.mrb[0].mxu0
    %1559 = vdwg.mxu0
    %1560 = vmatprep.subr.bf16.mxu0 %v1049
    %1561 = vmatpush1.bf16.msra.mxu0 %v1048
    %1562 = vmatprep.subr.bf16.mxu0 %v1053
    %1563 = vmatpush1.bf16.msra.mxu0 %v1052
    %1564 = vmatprep.subr.bf16.mxu0 %v1057
    %1565 = vmatpush1.bf16.msra.mxu0 %v1056
    %1566 = vmatprep.subr.bf16.mxu0 %v1061
    %1567 = vmatpush1.bf16.msra.mxu0 %v1060
    %1568 = vmatprep.subr.bf16.mxu0 %v1065
    %1569 = vmatpush1.bf16.msra.mxu0 %v1064
    %1570 = vmatprep.subr.bf16.mxu0 %v1069
    %1571 = vmatpush1.bf16.msra.mxu0 %v1068
    %1572 = vmatprep.subr.bf16.mxu0 %v1073
    %1573 = vmatpush1.bf16.msra.mxu0 %v1072
    %1574 = vmatprep.subr.bf16.mxu0 %v1077
    %1575 = vmatpush1.bf16.msra.mxu0 %v1076
    %1576 = vmatprep.subr.bf16.mxu0 %v1081
    %1577 = vmatpush1.bf16.msra.mxu0 %v1080
    %1578 = vmatprep.subr.bf16.mxu0 %v1085
    %1579 = vmatpush1.bf16.msra.mxu0 %v1084
    %1580 = vmatprep.subr.bf16.mxu0 %v1089
    %1581 = vmatpush1.bf16.msra.mxu0 %v1088
    %1582 = vmatprep.subr.bf16.mxu0 %v1093
    %1583 = vmatpush1.bf16.msra.mxu0 %v1092
    %1584 = vmatprep.subr.bf16.mxu0 %v1097
    %1585 = vmatpush1.bf16.msra.mxu0 %v1096
    %1586 = vmatprep.subr.bf16.mxu0 %v1101
    %1587 = vmatpush1.bf16.msra.mxu0 %v1100
    %1588 = vmatprep.subr.bf16.mxu0 %v1105
    %1589 = vmatpush1.bf16.msra.mxu0 %v1104
    %1590 = vmatprep.subr.bf16.mxu0 %v1109
    %1591 = vmatpush1.bf16.msra.mxu0 %v1108
    %1592 = vmatprep.mubr.bf16.mxu0 %v110
    %1593 = vmatmul.mubr.bf16.gmra.mrb[0].mxu0 %v109
    %v1594 = vpop.f32.mrb[0].mxu0
    %v1595 = vadd.f32 %v1554, %v1594
    %v1596 = vpop.f32.mrb[0].mxu0
    %v1597 = vadd.f32 %v1556, %v1596
    %v1598 = vpop.f32.mrb[0].mxu0
    %v1599 = vpop.f32.mrb[0].mxu0
    %1600 = vdwg.mxu0
    %1601 = vmatprep.subr.bf16.mxu0 %v1113
    %1602 = vmatpush1.bf16.msra.mxu0 %v1112
    %1603 = vmatprep.subr.bf16.mxu0 0
    %1604 = vmatpush1.bf16.msra.mxu0 0
    %1605 = vmatprep.subr.bf16.mxu0 0
    %1606 = vmatpush1.bf16.msra.mxu0 0
    %1607 = vmatprep.subr.bf16.mxu0 0
    %1608 = vmatpush1.bf16.msra.mxu0 0
    %1609 = vmatprep.subr.bf16.mxu0 0
    %1610 = vmatpush1.bf16.msra.mxu0 0
    %1611 = vmatprep.subr.bf16.mxu0 0
    %1612 = vmatpush1.bf16.msra.mxu0 0
    %1613 = vmatprep.subr.bf16.mxu0 0
    %1614 = vmatpush1.bf16.msra.mxu0 0
    %1615 = vmatprep.subr.bf16.mxu0 0
    %1616 = vmatpush1.bf16.msra.mxu0 0
    %1617 = vmatprep.subr.bf16.mxu0 0
    %1618 = vmatpush1.bf16.msra.mxu0 0
    %1619 = vmatprep.subr.bf16.mxu0 0
    %1620 = vmatpush1.bf16.msra.mxu0 0
    %1621 = vmatprep.subr.bf16.mxu0 0
    %1622 = vmatpush1.bf16.msra.mxu0 0
    %1623 = vmatprep.subr.bf16.mxu0 0
    %1624 = vmatpush1.bf16.msra.mxu0 0
    %1625 = vmatprep.subr.bf16.mxu0 0
    %1626 = vmatpush1.bf16.msra.mxu0 0
    %1627 = vmatprep.subr.bf16.mxu0 0
    %1628 = vmatpush1.bf16.msra.mxu0 0
    %1629 = vmatprep.subr.bf16.mxu0 0
    %1630 = vmatpush1.bf16.msra.mxu0 0
    %1631 = vmatprep.subr.bf16.mxu0 0
    %1632 = vmatpush1.bf16.msra.mxu0 0
    %1633 = vmatprep.mubr.bf16.mxu0 0
    %1634 = vmatmul.mubr.bf16.gmra.mrb[0].mxu0 %v1312
    %v1635 = vpop.f32.mrb[0].mxu0
    %v1636 = vadd.f32 %v1595, %v1635
    %v1637 = vpop.f32.mrb[0].mxu0
    %v1638 = vadd.f32 %v1597, %v1637
    %v1639 = vpop.f32.mrb[0].mxu0
    %v1640 = vpop.f32.mrb[0].mxu0
    %1641 = vdwg.mxu0
    %v1642 = vmax.f32 %v1472, 0.0
    %v1643 = vmax.f32 %v1474, 0.0
    %v1644 = vmax.f32 %v1636, 0.0
    %v1645 = vmax.f32 %v1638, 0.0
    %v1646 = vpack.c.bf16 %v1642, %v1642
    %v1647 = vpack.c.bf16 %v1643, %v1643
    %v1648 = vpack.c.bf16 %v1644, %v1644
    %v1649 = vpack.c.bf16 %v1645, %v1645
    %v1650 = vld [vmem:[#allocation7] sm:$0xf]
    %v1651 = vld [vmem:[#allocation7 + $0x4] sm:$0xf]
    %v1652 = vld [vmem:[#allocation7 + $0x8] sm:$0xf]
    %v1653 = vld [vmem:[#allocation7 + $0xc] sm:$0xf]
    %v1654 = vld [vmem:[#allocation7 + $0x10] sm:$0xf]
    %v1655 = vld [vmem:[#allocation7 + $0x14] sm:$0xf]
    %v1656 = vld [vmem:[#allocation7 + $0x18] sm:$0xf]
    %v1657 = vld [vmem:[#allocation7 + $0x1c] sm:$0xf]
    %v1658 = vld [vmem:[#allocation7 + $0x20] sm:$0xf]
    %v1659 = vld [vmem:[#allocation7 + $0x24] sm:$0xf]
    %v1660 = vld [vmem:[#allocation7 + $0x28] sm:$0xf]
    %v1661 = vld [vmem:[#allocation7 + $0x2c] sm:$0xf]
    %v1662 = vld [vmem:[#allocation7 + $0x30] sm:$0xf]
    %v1663 = vld [vmem:[#allocation7 + $0x34] sm:$0xf]
    %v1664 = vld [vmem:[#allocation7 + $0x38] sm:$0xf]
    %v1665 = vld [vmem:[#allocation7 + $0x3c] sm:$0xf]
    %v1666 = vld [vmem:[#allocation7 + $0x40] sm:$0xf]
    %v1667 = vld [vmem:[#allocation7 + $0x44] sm:$0xf]
    %v1668 = vld [vmem:[#allocation7 + $0x48] sm:$0xf]
    %v1669 = vld [vmem:[#allocation7 + $0x4c] sm:$0xf]
    %v1670 = vld [vmem:[#allocation7 + $0x50] sm:$0xf]
    %v1671 = vld [vmem:[#allocation7 + $0x54] sm:$0xf]
    %v1672 = vld [vmem:[#allocation7 + $0x58] sm:$0xf]
    %v1673 = vld [vmem:[#allocation7 + $0x5c] sm:$0xf]
    %v1674 = vld [vmem:[#allocation7 + $0x60] sm:$0xf]
    %v1675 = vld [vmem:[#allocation7 + $0x64] sm:$0xf]
    %v1676 = vld [vmem:[#allocation7 + $0x68] sm:$0xf]
    %v1677 = vld [vmem:[#allocation7 + $0x6c] sm:$0xf]
    %v1678 = vld [vmem:[#allocation7 + $0x70] sm:$0xf]
    %v1679 = vld [vmem:[#allocation7 + $0x74] sm:$0xf]
    %v1680 = vld [vmem:[#allocation7 + $0x78] sm:$0xf]
    %v1681 = vld [vmem:[#allocation7 + $0x7c] sm:$0xf]
    %v1682 = vld [vmem:[#allocation7 + $0x80] sm:$0xf]
    %v1683 = vld [vmem:[#allocation7 + $0x84] sm:$0xf]
    %v1684 = vld [vmem:[#allocation7 + $0x88] sm:$0xf]
    %v1685 = vld [vmem:[#allocation7 + $0x8c] sm:$0xf]
    %v1686 = vld [vmem:[#allocation7 + $0x90] sm:$0xf]
    %v1687 = vld [vmem:[#allocation7 + $0x94] sm:$0xf]
    %v1688 = vld [vmem:[#allocation7 + $0x98] sm:$0xf]
    %v1689 = vld [vmem:[#allocation7 + $0x9c] sm:$0xf]
    %v1690 = vld [vmem:[#allocation7 + $0xa0] sm:$0xf]
    %v1691 = vld [vmem:[#allocation7 + $0xa4] sm:$0xf]
    %v1692 = vld [vmem:[#allocation7 + $0xa8] sm:$0xf]
    %v1693 = vld [vmem:[#allocation7 + $0xac] sm:$0xf]
    %v1694 = vld [vmem:[#allocation7 + $0xb0] sm:$0xf]
    %v1695 = vld [vmem:[#allocation7 + $0xb4] sm:$0xf]
    %v1696 = vld [vmem:[#allocation7 + $0xb8] sm:$0xf]
    %v1697 = vld [vmem:[#allocation7 + $0xbc] sm:$0xf]
    %v1698 = vld [vmem:[#allocation7 + $0xc0] sm:$0xf]
    %v1699 = vld [vmem:[#allocation7 + $0xc4] sm:$0xf]
    %v1700 = vld [vmem:[#allocation7 + $0xc8] sm:$0xf]
    %v1701 = vld [vmem:[#allocation7 + $0xcc] sm:$0xf]
    %v1702 = vld [vmem:[#allocation7 + $0xd0] sm:$0xf]
    %v1703 = vld [vmem:[#allocation7 + $0xd4] sm:$0xf]
    %v1704 = vld [vmem:[#allocation7 + $0xd8] sm:$0xf]
    %v1705 = vld [vmem:[#allocation7 + $0xdc] sm:$0xf]
    %v1706 = vld [vmem:[#allocation7 + $0xe0] sm:$0xf]
    %v1707 = vld [vmem:[#allocation7 + $0xe4] sm:$0xf]
    %v1708 = vld [vmem:[#allocation7 + $0xe8] sm:$0xf]
    %v1709 = vld [vmem:[#allocation7 + $0xec] sm:$0xf]
    %v1710 = vld [vmem:[#allocation7 + $0xf0] sm:$0xf]
    %v1711 = vld [vmem:[#allocation7 + $0xf4] sm:$0xf]
    %v1712 = vld [vmem:[#allocation7 + $0xf8] sm:$0xf]
    %v1713 = vld [vmem:[#allocation7 + $0xfc] sm:$0xf]
    %v1714 = vld [vmem:[%s4] sm:$0x1]
    %v1716 = vlaneseq
    %v1717 = vshrl.u32 %v1716, 7
    %v1718 = vsub.s32 0, %v1717
    %v1719 = vrot.slane %v1714, %v1718
    %v1785 = vunpack.c.l.b16 %v1650
    %v1786 = vunpack.c.l.b16 %v1651
    %v1787 = vunpack.c.l.b16 %v1652
    %v1788 = vunpack.c.l.b16 %v1653
    %v1789 = vunpack.c.l.b16 %v1654
    %v1790 = vunpack.c.l.b16 %v1655
    %v1791 = vunpack.c.l.b16 %v1656
    %v1792 = vunpack.c.l.b16 %v1657
    %v1793 = vunpack.c.l.b16 %v1658
    %v1794 = vunpack.c.l.b16 %v1659
    %v1795 = vunpack.c.l.b16 %v1660
    %v1796 = vunpack.c.l.b16 %v1661
    %v1797 = vunpack.c.l.b16 %v1662
    %v1798 = vunpack.c.l.b16 %v1663
    %v1799 = vunpack.c.l.b16 %v1664
    %v1800 = vunpack.c.l.b16 %v1665
    %v1801 = vunpack.c.l.b16 %v1666
    %v1802 = vunpack.c.l.b16 %v1667
    %v1803 = vunpack.c.l.b16 %v1668
    %v1804 = vunpack.c.l.b16 %v1669
    %v1805 = vunpack.c.l.b16 %v1670
    %v1806 = vunpack.c.l.b16 %v1671
    %v1807 = vunpack.c.l.b16 %v1672
    %v1808 = vunpack.c.l.b16 %v1673
    %v1809 = vunpack.c.l.b16 %v1674
    %v1810 = vunpack.c.l.b16 %v1675
    %v1811 = vunpack.c.l.b16 %v1676
    %v1812 = vunpack.c.l.b16 %v1677
    %v1813 = vunpack.c.l.b16 %v1678
    %v1814 = vunpack.c.l.b16 %v1679
    %v1815 = vunpack.c.l.b16 %v1680
    %v1816 = vunpack.c.l.b16 %v1681
    %v1817 = vunpack.c.l.b16 %v1682
    %v1818 = vunpack.c.l.b16 %v1683
    %v1819 = vunpack.c.l.b16 %v1684
    %v1820 = vunpack.c.l.b16 %v1685
    %v1821 = vunpack.c.l.b16 %v1686
    %v1822 = vunpack.c.l.b16 %v1687
    %v1823 = vunpack.c.l.b16 %v1688
    %v1824 = vunpack.c.l.b16 %v1689
    %v1825 = vunpack.c.l.b16 %v1690
    %v1826 = vunpack.c.l.b16 %v1691
    %v1827 = vunpack.c.l.b16 %v1692
    %v1828 = vunpack.c.l.b16 %v1693
    %v1829 = vunpack.c.l.b16 %v1694
    %v1830 = vunpack.c.l.b16 %v1695
    %v1831 = vunpack.c.l.b16 %v1696
    %v1832 = vunpack.c.l.b16 %v1697
    %v1833 = vunpack.c.l.b16 %v1698
    %v1834 = vunpack.c.l.b16 %v1699
    %v1835 = vunpack.c.l.b16 %v1700
    %v1836 = vunpack.c.l.b16 %v1701
    %v1837 = vunpack.c.l.b16 %v1702
    %v1838 = vunpack.c.l.b16 %v1703
    %v1839 = vunpack.c.l.b16 %v1704
    %v1840 = vunpack.c.l.b16 %v1705
    %v1841 = vunpack.c.l.b16 %v1706
    %v1842 = vunpack.c.l.b16 %v1707
    %v1843 = vunpack.c.l.b16 %v1708
    %v1844 = vunpack.c.l.b16 %v1709
    %v1845 = vunpack.c.l.b16 %v1710
    %v1846 = vunpack.c.l.b16 %v1711
    %v1847 = vunpack.c.l.b16 %v1712
    %v1848 = vunpack.c.l.b16 %v1713
    %v1849 = vpack.c.b16 %v1786, %v1785
    %v1850 = vpack.c.b16 %v1788, %v1787
    %v1851 = vpack.c.b16 %v1790, %v1789
    %v1852 = vpack.c.b16 %v1792, %v1791
    %v1853 = vpack.c.b16 %v1794, %v1793
    %v1854 = vpack.c.b16 %v1796, %v1795
    %v1855 = vpack.c.b16 %v1798, %v1797
    %v1856 = vpack.c.b16 %v1800, %v1799
    %v1857 = vpack.c.b16 %v1802, %v1801
    %v1858 = vpack.c.b16 %v1804, %v1803
    %v1859 = vpack.c.b16 %v1806, %v1805
    %v1860 = vpack.c.b16 %v1808, %v1807
    %v1861 = vpack.c.b16 %v1810, %v1809
    %v1862 = vpack.c.b16 %v1812, %v1811
    %v1863 = vpack.c.b16 %v1814, %v1813
    %v1864 = vpack.c.b16 %v1816, %v1815
    %v1865 = vpack.c.b16 %v1818, %v1817
    %v1866 = vpack.c.b16 %v1820, %v1819
    %v1867 = vpack.c.b16 %v1822, %v1821
    %v1868 = vpack.c.b16 %v1824, %v1823
    %v1869 = vpack.c.b16 %v1826, %v1825
    %v1870 = vpack.c.b16 %v1828, %v1827
    %v1871 = vpack.c.b16 %v1830, %v1829
    %v1872 = vpack.c.b16 %v1832, %v1831
    %v1873 = vpack.c.b16 %v1834, %v1833
    %v1874 = vpack.c.b16 %v1836, %v1835
    %v1875 = vpack.c.b16 %v1838, %v1837
    %v1876 = vpack.c.b16 %v1840, %v1839
    %v1877 = vpack.c.b16 %v1842, %v1841
    %v1878 = vpack.c.b16 %v1844, %v1843
    %v1879 = vpack.c.b16 %v1846, %v1845
    %v1880 = vpack.c.b16 %v1848, %v1847
    %1913 = vmatprep.subr.bf16.mxu0 0
    %1914 = vmatpush1.bf16.msra.mxu0 %v1849
    %1915 = vmatprep.subr.bf16.mxu0 0
    %1916 = vmatpush1.bf16.msra.mxu0 %v1850
    %1917 = vmatprep.subr.bf16.mxu0 0
    %1918 = vmatpush1.bf16.msra.mxu0 %v1851
    %1919 = vmatprep.subr.bf16.mxu0 0
    %1920 = vmatpush1.bf16.msra.mxu0 %v1852
    %1921 = vmatprep.subr.bf16.mxu0 0
    %1922 = vmatpush1.bf16.msra.mxu0 %v1853
    %1923 = vmatprep.subr.bf16.mxu0 0
    %1924 = vmatpush1.bf16.msra.mxu0 %v1854
    %1925 = vmatprep.subr.bf16.mxu0 0
    %1926 = vmatpush1.bf16.msra.mxu0 %v1855
    %1927 = vmatprep.subr.bf16.mxu0 0
    %1928 = vmatpush1.bf16.msra.mxu0 %v1856
    %1929 = vmatprep.subr.bf16.mxu0 0
    %1930 = vmatpush1.bf16.msra.mxu0 %v1857
    %1931 = vmatprep.subr.bf16.mxu0 0
    %1932 = vmatpush1.bf16.msra.mxu0 %v1858
    %1933 = vmatprep.subr.bf16.mxu0 0
    %1934 = vmatpush1.bf16.msra.mxu0 %v1859
    %1935 = vmatprep.subr.bf16.mxu0 0
    %1936 = vmatpush1.bf16.msra.mxu0 %v1860
    %1937 = vmatprep.subr.bf16.mxu0 0
    %1938 = vmatpush1.bf16.msra.mxu0 %v1861
    %1939 = vmatprep.subr.bf16.mxu0 0
    %1940 = vmatpush1.bf16.msra.mxu0 %v1862
    %1941 = vmatprep.subr.bf16.mxu0 0
    %1942 = vmatpush1.bf16.msra.mxu0 %v1863
    %1943 = vmatprep.subr.bf16.mxu0 0
    %1944 = vmatpush1.bf16.msra.mxu0 %v1864
    %1945 = vmatprep.mubr.bf16.mxu0 %v1647
    %1946 = vmatmul.mubr.bf16.gmra.mrb[0].mxu0 %v1646
    %v1947 = vpop.f32.mrb[0].mxu0
    %v1948 = vadd.f32 %v1719, %v1947
    %v1949 = vpop.f32.mrb[0].mxu0
    %v1950 = vpop.f32.mrb[0].mxu0
    %v1951 = vpop.f32.mrb[0].mxu0
    %1952 = vdwg.mxu0
    %1953 = vmatprep.subr.bf16.mxu0 0
    %1954 = vmatpush1.bf16.msra.mxu0 %v1865
    %1955 = vmatprep.subr.bf16.mxu0 0
    %1956 = vmatpush1.bf16.msra.mxu0 %v1866
    %1957 = vmatprep.subr.bf16.mxu0 0
    %1958 = vmatpush1.bf16.msra.mxu0 %v1867
    %1959 = vmatprep.subr.bf16.mxu0 0
    %1960 = vmatpush1.bf16.msra.mxu0 %v1868
    %1961 = vmatprep.subr.bf16.mxu0 0
    %1962 = vmatpush1.bf16.msra.mxu0 %v1869
    %1963 = vmatprep.subr.bf16.mxu0 0
    %1964 = vmatpush1.bf16.msra.mxu0 %v1870
    %1965 = vmatprep.subr.bf16.mxu0 0
    %1966 = vmatpush1.bf16.msra.mxu0 %v1871
    %1967 = vmatprep.subr.bf16.mxu0 0
    %1968 = vmatpush1.bf16.msra.mxu0 %v1872
    %1969 = vmatprep.subr.bf16.mxu0 0
    %1970 = vmatpush1.bf16.msra.mxu0 %v1873
    %1971 = vmatprep.subr.bf16.mxu0 0
    %1972 = vmatpush1.bf16.msra.mxu0 %v1874
    %1973 = vmatprep.subr.bf16.mxu0 0
    %1974 = vmatpush1.bf16.msra.mxu0 %v1875
    %1975 = vmatprep.subr.bf16.mxu0 0
    %1976 = vmatpush1.bf16.msra.mxu0 %v1876
    %1977 = vmatprep.subr.bf16.mxu0 0
    %1978 = vmatpush1.bf16.msra.mxu0 %v1877
    %1979 = vmatprep.subr.bf16.mxu0 0
    %1980 = vmatpush1.bf16.msra.mxu0 %v1878
    %1981 = vmatprep.subr.bf16.mxu0 0
    %1982 = vmatpush1.bf16.msra.mxu0 %v1879
    %1983 = vmatprep.subr.bf16.mxu0 0
    %1984 = vmatpush1.bf16.msra.mxu0 %v1880
    %1985 = vmatprep.mubr.bf16.mxu0 %v1649
    %1986 = vmatmul.mubr.bf16.gmra.mrb[0].mxu0 %v1648
    %v1987 = vpop.f32.mrb[0].mxu0
    %v1988 = vadd.f32 %v1948, %v1987
    %v1989 = vpop.f32.mrb[0].mxu0
    %v1990 = vpop.f32.mrb[0].mxu0
    %v1991 = vpop.f32.mrb[0].mxu0
    %1992 = vdwg.mxu0
    %1993 = vst [vmem:[#allocation8] sm:$0x3] %v1988
    // Predicated region
    $region34: #{tpu_custom_call.1} parent=1 // pred_check
      _
    $region35: #{tpu_custom_call.1} parent=1 // pred_check_branch
      %1995 = sbr.rel (0) target = $region37
    $region36: #{tpu_custom_call.1} parent=1 // pred_region
      %s1997 = ssub.s32 32, 32
      %1998 = vsyncadd [#allocation4], %s1997
      %s2000 = sshll.u32 [#allocation8], 4
      %s2001 = int_to_ptr.vmem [resolvable:$true] %s2000
      %2003 = dma.vmem_to_hbm [thread:$0]  %s2001, 32, %s5, [#allocation4]
    $region37: #{tpu_custom_call.1} parent=1 // pred_fallthru
      _
    // Predicated region
    $region38: #{tpu_custom_call.1} parent=1 // pred_check
      _
    $region39: #{tpu_custom_call.1} parent=1 // pred_check_branch
      %2005 = sbr.rel (0) target = $region41
    $region40: #{tpu_custom_call.1} parent=1 // pred_region
      %2006 = dma.done [#allocation4], 32
    $region41: #{tpu_custom_call.1} parent=1 // pred_fallthru
      _
    %2007 = vsyncpa [#allocation3], 1
    %2008 = vsyncpa [#allocation6], 1
    %2009 = vsyncpa [#allocation4], 1

</llo_original>
